<compile_context>
chip_gen: v7x
topology: tpu7x:2x2x1
jax: 0.10.0
libtpu: 0.0.40
codegen_flags: <defaults>
</compile_context>

<pallas_src>
import functools

import jax
import jax.numpy as jnp
from jax.experimental import pallas as pl
from jax.experimental.pallas import tpu as pltpu

EPS = 1e-5
LANE = 128


def _round_up(v, m):
    return (v + m - 1) // m * m


def _pick_row_tile(m, cap=512):
    """Largest multiple-of-8 divisor of m that is <= cap (m is a multiple of 8)."""
    if m <= cap:
        return m
    for t in range(cap - cap % 8, 7, -8):
        if m % t == 0:
            return t
    return 8


def _vmem_limit_bytes():
    phys = 128 * 1024 * 1024
    try:
        phys = int(pltpu.get_tpu_info().vmem_capacity_bytes)
    except Exception:
        pass
    # leave headroom: ~96 MiB on 128-MiB parts (v5e/v6e), ~48 MiB on v7x.
    return int(min(phys * 3 // 4, 96 * 1024 * 1024))


_VMEM_LIMIT = _vmem_limit_bytes()


# --------------------------------------------------------------------------
# Pass A kernel: conv branches (shifted row-slab matmuls) + per-image stats
# grid = (N images,), 'parallel'
# --------------------------------------------------------------------------
def _conv_stats_kernel(*refs, branches, m_img, tm):
    """refs = (x_0, w_0, ..., x_{nb-1}, w_{nb-1},
               y_0, s1_0, s2_0, ..., y_{nb-1}, s1_{nb-1}, s2_{nb-1})."""
    nb = len(branches)
    nt = m_img // tm

    for b, offsets in enumerate(branches):
        x_ref = refs[2 * b]
        w_ref = refs[2 * b + 1]
        y_ref = refs[2 * nb + 3 * b]
        s1_ref = refs[2 * nb + 3 * b + 1]
        s2_ref = refs[2 * nb + 3 * b + 2]
        cp = y_ref.shape[-1]

        def tile_body(t, carry, x_ref=x_ref, w_ref=w_ref, y_ref=y_ref,
                      offsets=offsets):
            s1, s2 = carry
            r0 = pl.multiple_of(t * tm, tm)
            acc = jnp.dot(
                x_ref[0, pl.ds(pl.multiple_of(r0 + offsets[0], 8), tm), :],
                w_ref[0], preferred_element_type=jnp.float32)
            for s in range(1, len(offsets)):
                acc = acc + jnp.dot(
                    x_ref[0, pl.ds(pl.multiple_of(r0 + offsets[s], 8), tm), :],
                    w_ref[s], preferred_element_type=jnp.float32)
            y_ref[pl.ds(r0, tm), :] = acc.astype(y_ref.dtype)   # bf16 store
            return (s1 + jnp.sum(acc, axis=0, keepdims=True),
                    s2 + jnp.sum(acc * acc, axis=0, keepdims=True))

        s1, s2 = jax.lax.fori_loop(
            0, nt, tile_body,
            (jnp.zeros((1, cp), jnp.float32), jnp.zeros((1, cp), jnp.float32)),
            unroll=(nt <= 2))
        s1_ref[...] = s1
        s2_ref[...] = s2


def _conv_stats_pass(branches, m_img, tm):
    """branches: list of (slab (N,R,K), w (S,K,Cp), kh_row_offsets)."""
    N = branches[0][0].shape[0]
    Cp = branches[0][1].shape[-1]
    nb = len(branches)

    in_specs, args, off_meta = [], [], []
    out_specs, out_shapes = [], []
    for slab, w, offsets in branches:
        _, R, K = slab.shape
        S = w.shape[0]
        in_specs += [pl.BlockSpec((1, R, K), lambda n: (n, 0, 0)),
                     pl.BlockSpec((S, K, Cp), lambda n: (0, 0, 0))]
        args += [slab, w]
        off_meta.append(tuple(int(o) for o in offsets))
    for slab, _, _ in branches:
        out_specs += [pl.BlockSpec((m_img, Cp), lambda n: (n, 0)),
                      pl.BlockSpec((1, Cp), lambda n: (0, n)),     # lane-stacked
                      pl.BlockSpec((1, Cp), lambda n: (0, n))]
        out_shapes += [jax.ShapeDtypeStruct((N * m_img, Cp), slab.dtype),
                       jax.ShapeDtypeStruct((1, N * Cp), jnp.float32),
                       jax.ShapeDtypeStruct((1, N * Cp), jnp.float32)]

    kern = functools.partial(_conv_stats_kernel, branches=tuple(off_meta),
                             m_img=int(m_img), tm=int(tm))
    outs = pl.pallas_call(
        kern,
        grid=(N,),
        in_specs=in_specs,
        out_specs=tuple(out_specs),
        out_shape=tuple(out_shapes),
        compiler_params=pltpu.CompilerParams(
            dimension_semantics=("parallel",),
            vmem_limit_bytes=_VMEM_LIMIT),
    )(*args)
    return [tuple(outs[3 * i:3 * i + 3]) for i in range(nb)]


# --------------------------------------------------------------------------
# Pass B kernel: y*scale+shift -> ReLU (-> +residual [affine] -> ReLU)
# grid = (cdiv(M, TM),), 'parallel'
# --------------------------------------------------------------------------
def _bn_act_kernel(*refs, has_res, res_affine, cin, cp):
    if has_res and res_affine:
        y_ref, sc_ref, sh_ref, r_ref, rs_ref, rb_ref, o_ref = refs
    elif has_res:
        y_ref, sc_ref, sh_ref, r_ref, o_ref = refs
    else:
        y_ref, sc_ref, sh_ref, o_ref = refs

    z = jnp.maximum(y_ref[...].astype(jnp.float32) * sc_ref[...] + sh_ref[...],
                    0.0)
    if not has_res:
        o_ref[...] = z.astype(o_ref.dtype)
        return

    r = r_ref[...].astype(jnp.float32)
    if res_affine:                                  # shortcut-branch BN fused
        r = r * rs_ref[...] + rb_ref[...]
        o_ref[...] = jnp.maximum(z + r, 0.0).astype(o_ref.dtype)
    elif cin == cp:
        o_ref[...] = jnp.maximum(z + r, 0.0).astype(o_ref.dtype)
    else:
        # Narrow identity residual: data lives in the first `cin` lanes; the
        # zero-padded output channels of z are exact zeros after BN+ReLU.
        o_ref[:, :cin] = jnp.maximum(z[:, :cin] + r, 0.0).astype(o_ref.dtype)
        o_ref[:, cin:] = jnp.zeros((z.shape[0], cp - cin), o_ref.dtype)


def _bn_act(y, scale, shift, residual=None, res_scale=None, res_shift=None,
            out_dtype=jnp.float32):
    M, Cp = y.shape
    TM = min(512, M)                                 # fixed large tile + cdiv
    has_res = residual is not None
    res_affine = res_scale is not None
    cin = int(residual.shape[-1]) if has_res else Cp

    row_spec = pl.BlockSpec((TM, Cp), lambda i: (i, 0))
    vec_spec = pl.BlockSpec((1, Cp), lambda i: (0, 0))
    in_specs = [row_spec, vec_spec, vec_spec]
    args = [y, scale, shift]
    if has_res:
        in_specs.append(pl.BlockSpec((TM, cin), lambda i: (i, 0)))
        args.append(residual)
        if res_affine:
            in_specs += [vec_spec, vec_spec]
            args += [res_scale, res_shift]

    kern = functools.partial(_bn_act_kernel, has_res=has_res,
                             res_affine=res_affine, cin=cin, cp=Cp)
    return pl.pallas_call(
        kern,
        grid=(pl.cdiv(M, TM),),
        in_specs=in_specs,
        out_specs=row_spec,
        out_shape=jax.ShapeDtypeStruct((M, Cp), out_dtype),
        compiler_params=pltpu.CompilerParams(
            dimension_semantics=("parallel",),
            vmem_limit_bytes=_VMEM_LIMIT),
    )(*args)


# --------------------------------------------------------------------------
# BN finalize: tiny per-channel math between the two passes
# --------------------------------------------------------------------------
def _bn_scale_shift(s1_lanes, s2_lanes, count, gamma_p, beta_p):
    cp = gamma_p.shape[-1]
    s1 = jnp.sum(s1_lanes.reshape(-1, cp), axis=0, keepdims=True)
    s2 = jnp.sum(s2_lanes.reshape(-1, cp), axis=0, keepdims=True)
    mu = s1 / count
    var = jnp.maximum(s2 / count - mu * mu, 0.0)     # biased, one-pass
    inv = jax.lax.rsqrt(var + EPS)
    scale = gamma_p * inv
    shift = beta_p - mu * scale
    return scale, shift


# --------------------------------------------------------------------------
# Wrapper-side slab / weight preparation (plain JAX rearrangements, built in
# the matmul dtype so the largest tensors never exist in f32)
# --------------------------------------------------------------------------
def _slab_3x3(x_nhwc, stride):
    """kw-concat row slab for a 3x3 / pad=1 conv.

    Wo is zero-padded up to a multiple of 8 so the kh row offsets are
    sublane-aligned; the padded columns give exact-zero conv outputs and are
    sliced away by the wrapper.  Returns slab, kh offsets, (Ho, Wo, Wo_pad).
    """
    N, H, W, C = x_nhwc.shape
    xp = jnp.pad(x_nhwc, ((0, 0), (1, 1), (1, 1), (0, 0)))
    Ho = (H - 1) // stride + 1
    Wo = (W - 1) // stride + 1
    Wo_pad = _round_up(Wo, 8)
    cols = [xp[:, :, kw:kw + stride * Wo:stride, :] for kw in range(3)]
    band = jnp.concatenate(cols, axis=-1)                  # (N, H+2, Wo, 3C)
    if Wo_pad != Wo:
        band = jnp.pad(band, ((0, 0), (0, 0), (0, Wo_pad - Wo), (0, 0)))
    if stride == 1:
        slab = band.reshape(N, (H + 2) * Wo_pad, 3 * C)
        offsets = (0, Wo_pad, 2 * Wo_pad)                  # kh = 0, 1, 2
    else:                                                  # stride == 2
        even, odd = band[:, 0::2], band[:, 1::2]           # row-phase split
        he = even.shape[1]
        slab = jnp.concatenate([even, odd], axis=1).reshape(N, -1, 3 * C)
        offsets = (0, he * Wo_pad, Wo_pad)                 # kh = 0, 1, 2
    return slab, offsets, (Ho, Wo, Wo_pad)


def _slab_1x1_s2(x_nhwc, wo_pad):
    N, H, W, C = x_nhwc.shape
    xs = x_nhwc[:, ::2, ::2, :]
    Ho, Wo = xs.shape[1], xs.shape[2]
    if wo_pad != Wo:
        xs = jnp.pad(xs, ((0, 0), (0, 0), (0, wo_pad - Wo), (0, 0)))
    return xs.reshape(N, Ho * wo_pad, C)


def _w_3x3(w_oihw, cp, dtype):
    co, ci, kh, kw = w_oihw.shape
    wt = jnp.transpose(w_oihw.astype(dtype), (2, 3, 1, 0)).reshape(kh, kw * ci, co)
    return jnp.pad(wt, ((0, 0), (0, 0), (0, cp - co)))     # lane-pad Cout


def _w_1x1(w_oihw, cp, dtype):
    co, ci = w_oihw.shape[:2]
    wt = jnp.transpose(w_oihw.astype(dtype), (2, 3, 1, 0)).reshape(1, ci, co)
    return jnp.pad(wt, ((0, 0), (0, 0), (0, cp - co)))


# --------------------------------------------------------------------------
# Parameter init (PyTorch-default-style).  Conv biases are created but only
# used by the pure-JAX reference (they cancel under BatchNorm).
# --------------------------------------------------------------------------
def init_resblock_params(key, in_c, out_c, downsample):
    ks = jax.random.split(key, 3)

    def conv_init(k, cout, cin, kh, kw):
        fan_in = cin * kh * kw
        bound = 1.0 / (fan_in ** 0.5)
        kw_, kb_ = jax.random.split(k)
        w = jax.random.uniform(kw_, (cout, cin, kh, kw), jnp.float32,
                               -bound, bound)
        b = jax.random.uniform(kb_, (cout,), jnp.float32, -bound, bound)
        return w, b

    p = {}
    p['conv1_w'], p['conv1_b'] = conv_init(ks[0], out_c, in_c, 3, 3)
    p['conv2_w'], p['conv2_b'] = conv_init(ks[1], out_c, out_c, 3, 3)
    p['bn1_g'] = jnp.ones((out_c,), jnp.float32)
    p['bn1_b'] = jnp.zeros((out_c,), jnp.float32)
    p['bn2_g'] = jnp.ones((out_c,), jnp.float32)
    p['bn2_b'] = jnp.zeros((out_c,), jnp.float32)
    if downsample:
        p['sc_w'], p['sc_cb'] = conv_init(ks[2], out_c, in_c, 1, 1)
        p['sc_g'] = jnp.ones((out_c,), jnp.float32)
        p['sc_b'] = jnp.zeros((out_c,), jnp.float32)
    return p


# --------------------------------------------------------------------------
# ResBlock forward (Pallas)
# --------------------------------------------------------------------------
def resblock_forward(x_nchw, params, downsample, matmul_dtype=jnp.bfloat16):
    # NCHW -> NHWC, cast ONCE so all slab building / DMA happens at half width.
    x = jnp.transpose(x_nchw, (0, 2, 3, 1)).astype(matmul_dtype)
    N, H, W, Cin = x.shape
    out_c = params['conv1_w'].shape[0]
    Cp = _round_up(out_c, LANE)

    def padc(v):
        return jnp.pad(v.astype(jnp.float32), (0, Cp - out_c)).reshape(1, Cp)

    g1, b1 = padc(params['bn1_g']), padc(params['bn1_b'])
    g2, b2 = padc(params['bn2_g']), padc(params['bn2_b'])

    stride1 = 2 if downsample else 1

    # pass A #1: conv1 (+ fused 1x1 stride-2 shortcut) + batch stats
    slab1, off1, (Ho, Wo, Wo_pad) = _slab_3x3(x, stride1)
    m_img = Ho * Wo_pad
    count = N * Ho * Wo                       # BN reduces over real pixels only
    tm = _pick_row_tile(m_img)

    branches = [(slab1, _w_3x3(params['conv1_w'], Cp, matmul_dtype), off1)]
    if downsample:
        branches.append((_slab_1x1_s2(x, Wo_pad),
                         _w_1x1(params['sc_w'], Cp, matmul_dtype), (0,)))
    outs = _conv_stats_pass(branches, m_img, tm)

    y1, s11, s21 = outs[0]
    sc1, sh1 = _bn_scale_shift(s11, s21, count, g1, b1)
    h1 = _bn_act(y1, sc1, sh1, out_dtype=matmul_dtype)     # bf16 intermediate

    # pass A #2: conv2 + batch stats (real Wo / out_c sliced back out)
    h1_img = h1.reshape(N, Ho, Wo_pad, Cp)[:, :, :Wo, :out_c]
    slab2, off2, _ = _slab_3x3(h1_img, 1)
    outs2 = _conv_stats_pass(
        [(slab2, _w_3x3(params['conv2_w'], Cp, matmul_dtype), off2)], m_img, tm)
    y2, s12, s22 = outs2[0]
    sc2, sh2 = _bn_scale_shift(s12, s22, count, g2, b2)

    # pass B: bn2 -> relu -> +shortcut -> relu
    if downsample:
        ys, s1s, s2s = outs[1]
        scs, shs = _bn_scale_shift(s1s, s2s, count,
                                   padc(params['sc_g']), padc(params['sc_b']))
        out = _bn_act(y2, sc2, sh2, residual=ys, res_scale=scs, res_shift=shs,
                      out_dtype=jnp.float32)
    else:
        # identity shortcut (requires in_c == out_c, as in the PyTorch module);
        # passed un-padded in channels, added in-kernel into the first Cin lanes
        res = x
        if Wo_pad != W:
            res = jnp.pad(res, ((0, 0), (0, 0), (0, Wo_pad - W), (0, 0)))
        res = res.reshape(N * m_img, Cin)
        out = _bn_act(y2, sc2, sh2, residual=res, out_dtype=jnp.float32)

    out = out.reshape(N, Ho, Wo_pad, Cp)[:, :, :Wo, :out_c]
    return jnp.transpose(out, (0, 3, 1, 2))                # back to NCHW


# --------------------------------------------------------------------------
# Pure-JAX reference (mirrors the PyTorch forward, incl. conv biases)
# --------------------------------------------------------------------------
def _ref_conv(x, w, b, stride, pad):
    y = jax.lax.conv_general_dilated(
        x, w, (stride, stride), [(pad, pad), (pad, pad)],
        dimension_numbers=('NCHW', 'OIHW', 'NCHW'))
    return y + b[None, :, None, None]


def _ref_bn(y, g, b):
    mu = jnp.mean(y, axis=(0, 2, 3), keepdims=True)
    var = jnp.mean((y - mu) ** 2, axis=(0, 2, 3), keepdims=True)
    return g[None, :, None, None] * (y - mu) * jax.lax.rsqrt(var + EPS) \
        + b[None, :, None, None]


def resblock_reference(x, p, downsample):
    if downsample:
        sc = _ref_bn(_ref_conv(x, p['sc_w'], p['sc_cb'], 2, 0),
                     p['sc_g'], p['sc_b'])
        s1 = 2
    else:
        sc = x
        s1 = 1
    out = jax.nn.relu(_ref_bn(_ref_conv(x, p['conv1_w'], p['conv1_b'], s1, 1),
                              p['bn1_g'], p['bn1_b']))
    out = jax.nn.relu(_ref_bn(_ref_conv(out, p['conv2_w'], p['conv2_b'], 1, 1),
                              p['bn2_g'], p['bn2_b']))
    return jax.nn.relu(out + sc)


# --------------------------------------------------------------------------
if __name__ == "__main__":
    key = jax.random.PRNGKey(0)
    kx, kp1, kp2 = jax.random.split(key, 3)

    x = jax.random.normal(kx, (2, 4, 16, 16), dtype=jnp.float32)

    # downsample=True: 4 -> 8 channels, 16x16 -> 8x8
    p_ds = init_resblock_params(kp1, 4, 8, downsample=True)
    ref_ds = jax.block_until_ready(resblock_reference(x, p_ds, True))
    out_f32 = jax.block_until_ready(resblock_forward(x, p_ds, True, jnp.float32))
    assert out_f32.shape == (2, 8, 8, 8)
    assert jnp.allclose(out_f32, ref_ds, atol=2e-4, rtol=2e-4)   # f32 matmuls
    out_bf = jax.block_until_ready(resblock_forward(x, p_ds, True))
    assert out_bf.shape == (2, 8, 8, 8)
    assert jnp.allclose(out_bf, ref_ds, atol=1e-1, rtol=1e-1)    # bf16 path

    # downsample=False: identity shortcut, in_channels == out_channels == 4
    p_id = init_resblock_params(kp2, 4, 4, downsample=False)
    ref_id = jax.block_until_ready(resblock_reference(x, p_id, False))
    out_f32 = jax.block_until_ready(resblock_forward(x, p_id, False, jnp.float32))
    assert out_f32.shape == (2, 4, 16, 16)
    assert jnp.allclose(out_f32, ref_id, atol=2e-4, rtol=2e-4)
    out_bf = jax.block_until_ready(resblock_forward(x, p_id, False))
    assert out_bf.shape == (2, 4, 16, 16)
    assert jnp.allclose(out_bf, ref_id, atol=1e-1, rtol=1e-1)

    print("KERNEL_OK")
</pallas_src>

<mosaic_0001>
module attributes {stable_mosaic.version = 11 : i64} {
  func.func @_conv_stats_kernel(%arg0: i32, %arg1: memref<1x144x12xf32, #tpu.memory_space<vmem>>, %arg2: memref<3x12x128xf32, #tpu.memory_space<vmem>>, %arg3: memref<1x64x4xf32, #tpu.memory_space<vmem>>, %arg4: memref<1x4x128xf32, #tpu.memory_space<vmem>>, %arg5: memref<64x128xf32, #tpu.memory_space<vmem>>, %arg6: memref<1x128xf32, #tpu.memory_space<vmem>>, %arg7: memref<1x128xf32, #tpu.memory_space<vmem>>, %arg8: memref<64x128xf32, #tpu.memory_space<vmem>>, %arg9: memref<1x128xf32, #tpu.memory_space<vmem>>, %arg10: memref<1x128xf32, #tpu.memory_space<vmem>>) attributes {dimension_semantics = [#tpu.dimension_semantics<parallel>], iteration_bounds = array<i64: 2>, scalar_prefetch = 0 : i64, scratch_operands = 0 : i64, tpu.core_type = #tpu.core_type<tc>, window_params = [{transform_indices = @transform_0, window_bounds = array<i64: 1, 144, 12>}, {pipeline_mode = #tpu.pipeline_mode<synchronous>, transform_indices = @transform_1, window_bounds = array<i64: 3, 12, 128>}, {transform_indices = @transform_2, window_bounds = array<i64: 1, 64, 4>}, {pipeline_mode = #tpu.pipeline_mode<synchronous>, transform_indices = @transform_3, window_bounds = array<i64: 1, 4, 128>}, {transform_indices = @transform_4, window_bounds = array<i64: 64, 128>}, {transform_indices = @transform_5, window_bounds = array<i64: 1, 128>}, {transform_indices = @transform_6, window_bounds = array<i64: 1, 128>}, {transform_indices = @transform_7, window_bounds = array<i64: 64, 128>}, {transform_indices = @transform_8, window_bounds = array<i64: 1, 128>}, {transform_indices = @transform_9, window_bounds = array<i64: 1, 128>}]} {
    %cst = arith.constant 0.000000e+00 : f32
    %0 = vector.broadcast %cst : f32 to vector<1x128xf32>
    %cst_0 = arith.constant 0.000000e+00 : f32
    %1 = vector.broadcast %cst_0 : f32 to vector<1x128xf32>
    %c0_i32 = arith.constant 0 : i32
    %c64_i32 = arith.constant 64 : i32
    %2 = arith.muli %c0_i32, %c64_i32 : i32
    %3 = tpu.assume_multiple %2, 64 : i32
    %c0_i32_1 = arith.constant 0 : i32
    %4 = arith.addi %3, %c0_i32_1 : i32
    %5 = tpu.assume_multiple %4, 8 : i32
    %c0 = arith.constant 0 : index
    %6 = arith.index_cast %5 : i32 to index
    %c0_2 = arith.constant 0 : index
    %7 = vector.load %arg1[%c0, %6, %c0_2] : memref<1x144x12xf32, #tpu.memory_space<vmem>>, vector<1x64x12xf32>
    %8 = vector.shape_cast %7 : vector<1x64x12xf32> to vector<64x12xf32>
    %c0_3 = arith.constant 0 : index
    %c0_4 = arith.constant 0 : index
    %c0_5 = arith.constant 0 : index
    %9 = vector.load %arg2[%c0_3, %c0_4, %c0_5] : memref<3x12x128xf32, #tpu.memory_space<vmem>>, vector<1x12x128xf32>
    %10 = vector.shape_cast %9 : vector<1x12x128xf32> to vector<12x128xf32>
    %cst_6 = arith.constant dense<0.000000e+00> : vector<64x128xf32>
    %11 = tpu.matmul %8, %10, %cst_6 {dimension_numbers = #tpu.dot_dimension_numbers<[1], [0], [0], [1], [0, 0, 1, 1], [], []>} : vector<64x12xf32>, vector<12x128xf32>, vector<64x128xf32> -> vector<64x128xf32>
    %c72_i32 = arith.constant 72 : i32
    %12 = arith.addi %3, %c72_i32 : i32
    %13 = tpu.assume_multiple %12, 8 : i32
    %c0_7 = arith.constant 0 : index
    %14 = arith.index_cast %13 : i32 to index
    %c0_8 = arith.constant 0 : index
    %15 = vector.load %arg1[%c0_7, %14, %c0_8] : memref<1x144x12xf32, #tpu.memory_space<vmem>>, vector<1x64x12xf32>
    %16 = vector.shape_cast %15 : vector<1x64x12xf32> to vector<64x12xf32>
    %c1 = arith.constant 1 : index
    %c0_9 = arith.constant 0 : index
    %c0_10 = arith.constant 0 : index
    %17 = vector.load %arg2[%c1, %c0_9, %c0_10] : memref<3x12x128xf32, #tpu.memory_space<vmem>>, vector<1x12x128xf32>
    %18 = vector.shape_cast %17 : vector<1x12x128xf32> to vector<12x128xf32>
    %cst_11 = arith.constant dense<0.000000e+00> : vector<64x128xf32>
    %19 = tpu.matmul %16, %18, %cst_11 {dimension_numbers = #tpu.dot_dimension_numbers<[1], [0], [0], [1], [0, 0, 1, 1], [], []>} : vector<64x12xf32>, vector<12x128xf32>, vector<64x128xf32> -> vector<64x128xf32>
    %20 = arith.addf %11, %19 : vector<64x128xf32>
    %c8_i32 = arith.constant 8 : i32
    %21 = arith.addi %3, %c8_i32 : i32
    %22 = tpu.assume_multiple %21, 8 : i32
    %c0_12 = arith.constant 0 : index
    %23 = arith.index_cast %22 : i32 to index
    %c0_13 = arith.constant 0 : index
    %24 = vector.load %arg1[%c0_12, %23, %c0_13] : memref<1x144x12xf32, #tpu.memory_space<vmem>>, vector<1x64x12xf32>
    %25 = vector.shape_cast %24 : vector<1x64x12xf32> to vector<64x12xf32>
    %c2 = arith.constant 2 : index
    %c0_14 = arith.constant 0 : index
    %c0_15 = arith.constant 0 : index
    %26 = vector.load %arg2[%c2, %c0_14, %c0_15] : memref<3x12x128xf32, #tpu.memory_space<vmem>>, vector<1x12x128xf32>
    %27 = vector.shape_cast %26 : vector<1x12x128xf32> to vector<12x128xf32>
    %cst_16 = arith.constant dense<0.000000e+00> : vector<64x128xf32>
    %28 = tpu.matmul %25, %27, %cst_16 {dimension_numbers = #tpu.dot_dimension_numbers<[1], [0], [0], [1], [0, 0, 1, 1], [], []>} : vector<64x12xf32>, vector<12x128xf32>, vector<64x128xf32> -> vector<64x128xf32>
    %29 = arith.addf %20, %28 : vector<64x128xf32>
    %30 = arith.index_cast %3 : i32 to index
    %c0_17 = arith.constant 0 : index
    %31 = vector.load %arg5[%30, %c0_17] : memref<64x128xf32, #tpu.memory_space<vmem>>, vector<64x128xf32>
    tpu.vector_store %arg5[%30, %c0_17], %29 {strides = array<i32>} : memref<64x128xf32, #tpu.memory_space<vmem>>, vector<64x128xf32>,
    %cst_18 = arith.constant dense<0.000000e+00> : vector<128xf32>
    %32 = vector.multi_reduction <add>, %29, %cst_18 [0] : vector<64x128xf32> to vector<128xf32>
    %33 = vector.shape_cast %32 : vector<128xf32> to vector<1x128xf32>
    %34 = arith.addf %0, %33 : vector<1x128xf32>
    %35 = arith.mulf %29, %29 : vector<64x128xf32>
    %cst_19 = arith.constant dense<0.000000e+00> : vector<128xf32>
    %36 = vector.multi_reduction <add>, %35, %cst_19 [0] : vector<64x128xf32> to vector<128xf32>
    %37 = vector.shape_cast %36 : vector<128xf32> to vector<1x128xf32>
    %38 = arith.addf %1, %37 : vector<1x128xf32>
    %c1_i32 = arith.constant 1 : i32
    %c0_20 = arith.constant 0 : index
    %c0_21 = arith.constant 0 : index
    %39 = vector.load %arg6[%c0_20, %c0_21] : memref<1x128xf32, #tpu.memory_space<vmem>>, vector<1x128xf32>
    tpu.vector_store %arg6[%c0_20, %c0_21], %34 {strides = array<i32>} : memref<1x128xf32, #tpu.memory_space<vmem>>, vector<1x128xf32>,
    %c0_22 = arith.constant 0 : index
    %c0_23 = arith.constant 0 : index
    %40 = vector.load %arg7[%c0_22, %c0_23] : memref<1x128xf32, #tpu.memory_space<vmem>>, vector<1x128xf32>
    tpu.vector_store %arg7[%c0_22, %c0_23], %38 {strides = array<i32>} : memref<1x128xf32, #tpu.memory_space<vmem>>, vector<1x128xf32>,
    %cst_24 = arith.constant 0.000000e+00 : f32
    %41 = vector.broadcast %cst_24 : f32 to vector<1x128xf32>
    %cst_25 = arith.constant 0.000000e+00 : f32
    %42 = vector.broadcast %cst_25 : f32 to vector<1x128xf32>
    %c0_i32_26 = arith.constant 0 : i32
    %c64_i32_27 = arith.constant 64 : i32
    %43 = arith.muli %c0_i32_26, %c64_i32_27 : i32
    %44 = tpu.assume_multiple %43, 64 : i32
    %c0_i32_28 = arith.constant 0 : i32
    %45 = arith.addi %44, %c0_i32_28 : i32
    %46 = tpu.assume_multiple %45, 8 : i32
    %c0_29 = arith.constant 0 : index
    %47 = arith.index_cast %46 : i32 to index
    %c0_30 = arith.constant 0 : index
    %48 = vector.load %arg3[%c0_29, %47, %c0_30] : memref<1x64x4xf32, #tpu.memory_space<vmem>>, vector<1x64x4xf32>
    %49 = vector.shape_cast %48 : vector<1x64x4xf32> to vector<64x4xf32>
    %c0_31 = arith.constant 0 : index
    %c0_32 = arith.constant 0 : index
    %c0_33 = arith.constant 0 : index
    %50 = vector.load %arg4[%c0_31, %c0_32, %c0_33] : memref<1x4x128xf32, #tpu.memory_space<vmem>>, vector<1x4x128xf32>
    %51 = vector.shape_cast %50 : vector<1x4x128xf32> to vector<4x128xf32>
    %cst_34 = arith.constant dense<0.000000e+00> : vector<64x128xf32>
    %52 = tpu.matmul %49, %51, %cst_34 {dimension_numbers = #tpu.dot_dimension_numbers<[1], [0], [0], [1], [0, 0, 1, 1], [], []>} : vector<64x4xf32>, vector<4x128xf32>, vector<64x128xf32> -> vector<64x128xf32>
    %53 = arith.index_cast %44 : i32 to index
    %c0_35 = arith.constant 0 : index
    %54 = vector.load %arg8[%53, %c0_35] : memref<64x128xf32, #tpu.memory_space<vmem>>, vector<64x128xf32>
    tpu.vector_store %arg8[%53, %c0_35], %52 {strides = array<i32>} : memref<64x128xf32, #tpu.memory_space<vmem>>, vector<64x128xf32>,
    %cst_36 = arith.constant dense<0.000000e+00> : vector<128xf32>
    %55 = vector.multi_reduction <add>, %52, %cst_36 [0] : vector<64x128xf32> to vector<128xf32>
    %56 = vector.shape_cast %55 : vector<128xf32> to vector<1x128xf32>
    %57 = arith.addf %41, %56 : vector<1x128xf32>
    %58 = arith.mulf %52, %52 : vector<64x128xf32>
    %cst_37 = arith.constant dense<0.000000e+00> : vector<128xf32>
    %59 = vector.multi_reduction <add>, %58, %cst_37 [0] : vector<64x128xf32> to vector<128xf32>
    %60 = vector.shape_cast %59 : vector<128xf32> to vector<1x128xf32>
    %61 = arith.addf %42, %60 : vector<1x128xf32>
    %c1_i32_38 = arith.constant 1 : i32
    %c0_39 = arith.constant 0 : index
    %c0_40 = arith.constant 0 : index
    %62 = vector.load %arg9[%c0_39, %c0_40] : memref<1x128xf32, #tpu.memory_space<vmem>>, vector<1x128xf32>
    tpu.vector_store %arg9[%c0_39, %c0_40], %57 {strides = array<i32>} : memref<1x128xf32, #tpu.memory_space<vmem>>, vector<1x128xf32>,
    %c0_41 = arith.constant 0 : index
    %c0_42 = arith.constant 0 : index
    %63 = vector.load %arg10[%c0_41, %c0_42] : memref<1x128xf32, #tpu.memory_space<vmem>>, vector<1x128xf32>
    tpu.vector_store %arg10[%c0_41, %c0_42], %61 {strides = array<i32>} : memref<1x128xf32, #tpu.memory_space<vmem>>, vector<1x128xf32>,
    return
  }
  func.func @transform_0(%arg0: i32) -> (i32, i32, i32) {
    %c0_i32 = arith.constant 0 : i32
    %c0_i32_0 = arith.constant 0 : i32
    %c0_i32_1 = arith.constant 0 : i32
    return %arg0, %c0_i32, %c0_i32_0 : i32, i32, i32
  }
  func.func @transform_1(%arg0: i32) -> (i32, i32, i32) {
    %c0_i32 = arith.constant 0 : i32
    %c0_i32_0 = arith.constant 0 : i32
    %c0_i32_1 = arith.constant 0 : i32
    %c0_i32_2 = arith.constant 0 : i32
    return %c0_i32, %c0_i32_0, %c0_i32_1 : i32, i32, i32
  }
  func.func @transform_2(%arg0: i32) -> (i32, i32, i32) {
    %c0_i32 = arith.constant 0 : i32
    %c0_i32_0 = arith.constant 0 : i32
    %c0_i32_1 = arith.constant 0 : i32
    return %arg0, %c0_i32, %c0_i32_0 : i32, i32, i32
  }
  func.func @transform_3(%arg0: i32) -> (i32, i32, i32) {
    %c0_i32 = arith.constant 0 : i32
    %c0_i32_0 = arith.constant 0 : i32
    %c0_i32_1 = arith.constant 0 : i32
    %c0_i32_2 = arith.constant 0 : i32
    return %c0_i32, %c0_i32_0, %c0_i32_1 : i32, i32, i32
  }
  func.func @transform_4(%arg0: i32) -> (i32, i32) {
    %c0_i32 = arith.constant 0 : i32
    %c0_i32_0 = arith.constant 0 : i32
    return %arg0, %c0_i32 : i32, i32
  }
  func.func @transform_5(%arg0: i32) -> (i32, i32) {
    %c0_i32 = arith.constant 0 : i32
    %c0_i32_0 = arith.constant 0 : i32
    return %c0_i32, %arg0 : i32, i32
  }
  func.func @transform_6(%arg0: i32) -> (i32, i32) {
    %c0_i32 = arith.constant 0 : i32
    %c0_i32_0 = arith.constant 0 : i32
    return %c0_i32, %arg0 : i32, i32
  }
  func.func @transform_7(%arg0: i32) -> (i32, i32) {
    %c0_i32 = arith.constant 0 : i32
    %c0_i32_0 = arith.constant 0 : i32
    return %arg0, %c0_i32 : i32, i32
  }
  func.func @transform_8(%arg0: i32) -> (i32, i32) {
    %c0_i32 = arith.constant 0 : i32
    %c0_i32_0 = arith.constant 0 : i32
    return %c0_i32, %arg0 : i32, i32
  }
  func.func @transform_9(%arg0: i32) -> (i32, i32) {
    %c0_i32 = arith.constant 0 : i32
    %c0_i32_0 = arith.constant 0 : i32
    return %c0_i32, %arg0 : i32, i32
  }
}

</mosaic_0001>

<llo_original>
// kernel: tpu_custom_call.1
$region0: #{tpu_custom_call.1}
  #allocation0 [shape = 'u32[]', space=smem, size = 0x4, offset = 0x4, fixed_abs, tag = 'smem constant byte address 0x4 - core index']
  #allocation1 [shape = 'u32[144,128]{1,0:T(1,128)}', space=vmem, size = 0x12000, scoped, tag = 'internal scratch']
  %s0 = inlined_call_operand.hbm [shape: f32[2,144,12], index: 0, kind: input, shape index: {}]
  %s1 = inlined_call_operand.hbm [shape: f32[3,12,128], index: 1, kind: input, shape index: {}]
  %s2 = inlined_call_operand.hbm [shape: f32[2,64,4], index: 2, kind: input, shape index: {}]
  %s3 = inlined_call_operand.hbm [shape: f32[1,4,128], index: 3, kind: input, shape index: {}]
  %s4 = inlined_call_operand.hbm [shape: f32[128,128], index: 4, kind: output, shape index: {0}]
  %s5 = inlined_call_operand.hbm [shape: f32[1,256], index: 5, kind: output, shape index: {1}]
  %s6 = inlined_call_operand.hbm [shape: f32[1,256], index: 6, kind: output, shape index: {2}]
  %s7 = inlined_call_operand.hbm [shape: f32[128,128], index: 7, kind: output, shape index: {3}]
  %s8 = inlined_call_operand.hbm [shape: f32[1,256], index: 8, kind: output, shape index: {4}]
  %s9 = inlined_call_operand.hbm [shape: f32[1,256], index: 9, kind: output, shape index: {5}]
  %10 = xla_tuple %s4, %s5, %s6, %s7, %s8, %s9
  %s11 = sld [smem:[#allocation0]]
  $region105: #{tpu_custom_call.1} parent=0
    _
  %s13 = ssub.s32 1, %s11
  %s14 = scalar_select 0, %s13, %s11
  $region1: #{tpu_custom_call.1} parent=0
    #allocation2 [shape = 'u8[147456]{0}', space=vmem, size = 0x24000, scoped, tag = 'input window, operand 0']
    #allocation3 [shape = 's32[2]{0}', space=sflag, size = 0x8, scoped, tag = 'scoped memory for tpu_custom_call.1']
    #allocation4 [shape = 's32[2]{0}', space=sflag, size = 0x8, scoped, tag = 'scoped memory for tpu_custom_call.1']
    #allocation5 [shape = 'u8[24576]{0}', space=vmem, size = 0x6000, scoped, tag = 'input window, operand 1, single buffered']
    #allocation6 [shape = 's32[1]{0}', space=sflag, size = 0x4, scoped, tag = 'scoped memory for tpu_custom_call.1']
    #allocation7 [shape = 'u8[65536]{0}', space=vmem, size = 0x10000, scoped, tag = 'input window, operand 2']
    #allocation8 [shape = 'u8[2048]{0}', space=vmem, size = 0x800, scoped, tag = 'input window, operand 3, single buffered']
    #allocation9 [shape = 'u8[65536]{0}', space=vmem, size = 0x10000, scoped, tag = 'output window, operand 0']
    #allocation10 [shape = 'u8[1024]{0}', space=vmem, size = 0x400, scoped, tag = 'output window, operand 1']
    #allocation11 [shape = 's32[2]{0}', space=sflag, size = 0x8, scoped, tag = 'scoped memory for tpu_custom_call.1']
    #allocation12 [shape = 'u8[1024]{0}', space=vmem, size = 0x400, scoped, tag = 'output window, operand 2']
    #allocation13 [shape = 'u8[65536]{0}', space=vmem, size = 0x10000, scoped, tag = 'output window, operand 3']
    #allocation14 [shape = 's32[2]{0}', space=sflag, size = 0x8, scoped, tag = 'scoped memory for tpu_custom_call.1']
    #allocation15 [shape = 'u8[1024]{0}', space=vmem, size = 0x400, scoped, tag = 'output window, operand 4']
    #allocation16 [shape = 'u8[1024]{0}', space=vmem, size = 0x400, scoped, tag = 'output window, operand 5']
    #allocation17 [shape = 's32[2]{0}', space=sflag, size = 0x8, scoped, tag = 'scoped memory for tpu_custom_call.1']
    %15 = vsyncpa [#allocation3], 0
    %s16 = scalar_lea.sflag [#allocation3], 1
    %17 = vsyncpa %s16, 0
    %18 = vsyncpa [#allocation6], 0
    %19 = vsyncpa [#allocation4], 0
    %s20 = scalar_lea.sflag [#allocation4], 1
    %21 = vsyncpa %s20, 0
    %22 = vsyncpa [#allocation11], 0
    %s23 = scalar_lea.sflag [#allocation11], 1
    %24 = vsyncpa %s23, 0
    %25 = vsyncpa [#allocation14], 0
    %s26 = scalar_lea.sflag [#allocation14], 1
    %27 = vsyncpa %s26, 0
    %28 = vsyncpa [#allocation17], 0
    %s29 = scalar_lea.sflag [#allocation17], 1
    %30 = vsyncpa %s29, 0
    loop: start=0, step=1, limit=4
    $region2: #{tpu_custom_call.1} parent=1 // loop_pre_header
      _
    $region3: #{tpu_custom_call.1} parent=1 // loop_header
      %s32 = sphi 0, %s36
      %p33 = scmp.ge.s32.totalorder %s32, 4
      %s42 = sphi 0, %s44
      %s45 = sphi 0, %s42
      %s46 = sphi 0, %s45
      %s62 = sphi 0, %s46
      %s66 = sphi 0, %s66
      %s68 = sphi 0, %s66
      %s69 = sphi 0, %s68
      %s83 = sphi 0, %s69
      %s89 = sphi 0, %s91
      %s92 = sphi 0, %s89
      %s93 = sphi 0, %s92
      %s109 = sphi 0, %s93
      %s113 = sphi 0, %s113
      %s115 = sphi 0, %s113
      %s116 = sphi 0, %s115
      %s130 = sphi 0, %s116
      %s136 = sphi 0, %s138
      %s139 = sphi 0, %s136
      %s140 = sphi 0, %s139
      %s156 = sphi 0, %s140
      %s162 = sphi 0, %s164
      %s165 = sphi 0, %s162
      %s166 = sphi 0, %s165
      %s182 = sphi 0, %s166
      %s188 = sphi 0, %s190
      %s191 = sphi 0, %s188
      %s192 = sphi 0, %s191
      %s208 = sphi 0, %s192
      %s214 = sphi 0, %s216
      %s217 = sphi 0, %s214
      %s218 = sphi 0, %s217
      %s234 = sphi 0, %s218
      %s240 = sphi 0, %s242
      %s243 = sphi 0, %s240
      %s244 = sphi 0, %s243
      %s260 = sphi 0, %s244
      %s266 = sphi 0, %s268
      %s269 = sphi 0, %s266
      %s270 = sphi 0, %s269
      %s286 = sphi 0, %s270
    $region4: #{tpu_custom_call.1} parent=1 // loop_header_branch
      %35 = sbr.rel (%p33) target = $region8
    $region5: #{tpu_custom_call.1} parent=1 // loop_body
      %s37 = ssub.s32 %s32, 1
      %s38 = ssub.s32 %s32, 2
      %s39 = sadd.s32 %s32, 1
      %s40 = ssub.s32 %s32, %s39
      %p41 = scmp.eq.s32.totalorder %s40, 0
      %s43 = sadd.s32 %s42, 1
      %s44 = scalar_select %p41, %s42, %s43
      %p47 = pneg %p41
      %p48 = scmp.eq.s32.totalorder %s32, 1
      %p49 = por %p47, %p48
      %p50 = scmp.ne.s32.totalorder %s42, %s45
      %p51 = scmp.eq.s32.totalorder %s32, 0
      %p52 = por %p50, %p51
      %p53 = scmp.ne.s32.totalorder %s42, %s45
      %p54 = scmp.eq.s32.totalorder %s37, 1
      %p55 = por %p53, %p54
      %p56 = scmp.ne.s32.totalorder %s45, %s46
      %p57 = scmp.eq.s32.totalorder %s37, 0
      %p58 = por %p56, %p57
      %p59 = scmp.ne.s32.totalorder %s45, %s46
      %p60 = scmp.eq.s32.totalorder %s38, 1
      %p61 = por %p59, %p60
      %p63 = scmp.ne.s32.totalorder %s46, %s62
      %p64 = scmp.eq.s32.totalorder %s38, 0
      %p65 = por %p63, %p64
      %s67 = sadd.s32 %s66, 1
      %p70 = scmp.eq.s32.totalorder %s32, 1
      %p71 = scmp.ne.s32.totalorder %s66, %s68
      %p72 = scmp.eq.s32.totalorder %s32, 0
      %p73 = por %p71, %p72
      %p74 = scmp.ne.s32.totalorder %s66, %s68
      %p75 = scmp.eq.s32.totalorder %s37, 1
      %p76 = por %p74, %p75
      %p77 = scmp.ne.s32.totalorder %s68, %s69
      %p78 = scmp.eq.s32.totalorder %s37, 0
      %p79 = por %p77, %p78
      %p80 = scmp.ne.s32.totalorder %s68, %s69
      %p81 = scmp.eq.s32.totalorder %s38, 1
      %p82 = por %p80, %p81
      %p84 = scmp.ne.s32.totalorder %s69, %s83
      %p85 = scmp.eq.s32.totalorder %s38, 0
      %p86 = por %p84, %p85
      %s87 = ssub.s32 %s32, %s39
      %p88 = scmp.eq.s32.totalorder %s87, 0
      %s90 = sadd.s32 %s89, 1
      %s91 = scalar_select %p88, %s89, %s90
      %p94 = pneg %p88
      %p95 = scmp.eq.s32.totalorder %s32, 1
      %p96 = por %p94, %p95
      %p97 = scmp.ne.s32.totalorder %s89, %s92
      %p98 = scmp.eq.s32.totalorder %s32, 0
      %p99 = por %p97, %p98
      %p100 = scmp.ne.s32.totalorder %s89, %s92
      %p101 = scmp.eq.s32.totalorder %s37, 1
      %p102 = por %p100, %p101
      %p103 = scmp.ne.s32.totalorder %s92, %s93
      %p104 = scmp.eq.s32.totalorder %s37, 0
      %p105 = por %p103, %p104
      %p106 = scmp.ne.s32.totalorder %s92, %s93
      %p107 = scmp.eq.s32.totalorder %s38, 1
      %p108 = por %p106, %p107
      %p110 = scmp.ne.s32.totalorder %s93, %s109
      %p111 = scmp.eq.s32.totalorder %s38, 0
      %p112 = por %p110, %p111
      %s114 = sadd.s32 %s113, 1
      %p117 = scmp.eq.s32.totalorder %s32, 1
      %p118 = scmp.ne.s32.totalorder %s113, %s115
      %p119 = scmp.eq.s32.totalorder %s32, 0
      %p120 = por %p118, %p119
      %p121 = scmp.ne.s32.totalorder %s113, %s115
      %p122 = scmp.eq.s32.totalorder %s37, 1
      %p123 = por %p121, %p122
      %p124 = scmp.ne.s32.totalorder %s115, %s116
      %p125 = scmp.eq.s32.totalorder %s37, 0
      %p126 = por %p124, %p125
      %p127 = scmp.ne.s32.totalorder %s115, %s116
      %p128 = scmp.eq.s32.totalorder %s38, 1
      %p129 = por %p127, %p128
      %p131 = scmp.ne.s32.totalorder %s116, %s130
      %p132 = scmp.eq.s32.totalorder %s38, 0
      %p133 = por %p131, %p132
      %s134 = ssub.s32 %s32, %s39
      %p135 = scmp.eq.s32.totalorder %s134, 0
      %s137 = sadd.s32 %s136, 1
      %s138 = scalar_select %p135, %s136, %s137
      %p141 = pneg %p135
      %p142 = scmp.eq.s32.totalorder %s32, 1
      %p143 = por %p141, %p142
      %p144 = scmp.ne.s32.totalorder %s136, %s139
      %p145 = scmp.eq.s32.totalorder %s32, 0
      %p146 = por %p144, %p145
      %p147 = scmp.ne.s32.totalorder %s136, %s139
      %p148 = scmp.eq.s32.totalorder %s37, 1
      %p149 = por %p147, %p148
      %p150 = scmp.ne.s32.totalorder %s139, %s140
      %p151 = scmp.eq.s32.totalorder %s37, 0
      %p152 = por %p150, %p151
      %p153 = scmp.ne.s32.totalorder %s139, %s140
      %p154 = scmp.eq.s32.totalorder %s38, 1
      %p155 = por %p153, %p154
      %p157 = scmp.ne.s32.totalorder %s140, %s156
      %p158 = scmp.eq.s32.totalorder %s38, 0
      %p159 = por %p157, %p158
      %s160 = ssub.s32 %s32, %s39
      %p161 = scmp.eq.s32.totalorder %s160, 0
      %s163 = sadd.s32 %s162, 1
      %s164 = scalar_select %p161, %s162, %s163
      %p167 = pneg %p161
      %p168 = scmp.eq.s32.totalorder %s32, 1
      %p169 = por %p167, %p168
      %p170 = scmp.ne.s32.totalorder %s162, %s165
      %p171 = scmp.eq.s32.totalorder %s32, 0
      %p172 = por %p170, %p171
      %p173 = scmp.ne.s32.totalorder %s162, %s165
      %p174 = scmp.eq.s32.totalorder %s37, 1
      %p175 = por %p173, %p174
      %p176 = scmp.ne.s32.totalorder %s165, %s166
      %p177 = scmp.eq.s32.totalorder %s37, 0
      %p178 = por %p176, %p177
      %p179 = scmp.ne.s32.totalorder %s165, %s166
      %p180 = scmp.eq.s32.totalorder %s38, 1
      %p181 = por %p179, %p180
      %p183 = scmp.ne.s32.totalorder %s166, %s182
      %p184 = scmp.eq.s32.totalorder %s38, 0
      %p185 = por %p183, %p184
      %s186 = ssub.s32 %s32, %s39
      %p187 = scmp.eq.s32.totalorder %s186, 0
      %s189 = sadd.s32 %s188, 1
      %s190 = scalar_select %p187, %s188, %s189
      %p193 = pneg %p187
      %p194 = scmp.eq.s32.totalorder %s32, 1
      %p195 = por %p193, %p194
      %p196 = scmp.ne.s32.totalorder %s188, %s191
      %p197 = scmp.eq.s32.totalorder %s32, 0
      %p198 = por %p196, %p197
      %p199 = scmp.ne.s32.totalorder %s188, %s191
      %p200 = scmp.eq.s32.totalorder %s37, 1
      %p201 = por %p199, %p200
      %p202 = scmp.ne.s32.totalorder %s191, %s192
      %p203 = scmp.eq.s32.totalorder %s37, 0
      %p204 = por %p202, %p203
      %p205 = scmp.ne.s32.totalorder %s191, %s192
      %p206 = scmp.eq.s32.totalorder %s38, 1
      %p207 = por %p205, %p206
      %p209 = scmp.ne.s32.totalorder %s192, %s208
      %p210 = scmp.eq.s32.totalorder %s38, 0
      %p211 = por %p209, %p210
      %s212 = ssub.s32 %s32, %s39
      %p213 = scmp.eq.s32.totalorder %s212, 0
      %s215 = sadd.s32 %s214, 1
      %s216 = scalar_select %p213, %s214, %s215
      %p219 = pneg %p213
      %p220 = scmp.eq.s32.totalorder %s32, 1
      %p221 = por %p219, %p220
      %p222 = scmp.ne.s32.totalorder %s214, %s217
      %p223 = scmp.eq.s32.totalorder %s32, 0
      %p224 = por %p222, %p223
      %p225 = scmp.ne.s32.totalorder %s214, %s217
      %p226 = scmp.eq.s32.totalorder %s37, 1
      %p227 = por %p225, %p226
      %p228 = scmp.ne.s32.totalorder %s217, %s218
      %p229 = scmp.eq.s32.totalorder %s37, 0
      %p230 = por %p228, %p229
      %p231 = scmp.ne.s32.totalorder %s217, %s218
      %p232 = scmp.eq.s32.totalorder %s38, 1
      %p233 = por %p231, %p232
      %p235 = scmp.ne.s32.totalorder %s218, %s234
      %p236 = scmp.eq.s32.totalorder %s38, 0
      %p237 = por %p235, %p236
      %s238 = ssub.s32 %s32, %s39
      %p239 = scmp.eq.s32.totalorder %s238, 0
      %s241 = sadd.s32 %s240, 1
      %s242 = scalar_select %p239, %s240, %s241
      %p245 = pneg %p239
      %p246 = scmp.eq.s32.totalorder %s32, 1
      %p247 = por %p245, %p246
      %p248 = scmp.ne.s32.totalorder %s240, %s243
      %p249 = scmp.eq.s32.totalorder %s32, 0
      %p250 = por %p248, %p249
      %p251 = scmp.ne.s32.totalorder %s240, %s243
      %p252 = scmp.eq.s32.totalorder %s37, 1
      %p253 = por %p251, %p252
      %p254 = scmp.ne.s32.totalorder %s243, %s244
      %p255 = scmp.eq.s32.totalorder %s37, 0
      %p256 = por %p254, %p255
      %p257 = scmp.ne.s32.totalorder %s243, %s244
      %p258 = scmp.eq.s32.totalorder %s38, 1
      %p259 = por %p257, %p258
      %p261 = scmp.ne.s32.totalorder %s244, %s260
      %p262 = scmp.eq.s32.totalorder %s38, 0
      %p263 = por %p261, %p262
      %s264 = ssub.s32 %s32, %s39
      %p265 = scmp.eq.s32.totalorder %s264, 0
      %s267 = sadd.s32 %s266, 1
      %s268 = scalar_select %p265, %s266, %s267
      %p271 = pneg %p265
      %p272 = scmp.eq.s32.totalorder %s32, 1
      %p273 = por %p271, %p272
      %p274 = scmp.ne.s32.totalorder %s266, %s269
      %p275 = scmp.eq.s32.totalorder %s32, 0
      %p276 = por %p274, %p275
      %p277 = scmp.ne.s32.totalorder %s266, %s269
      %p278 = scmp.eq.s32.totalorder %s37, 1
      %p279 = por %p277, %p278
      %p280 = scmp.ne.s32.totalorder %s269, %s270
      %p281 = scmp.eq.s32.totalorder %s37, 0
      %p282 = por %p280, %p281
      %p283 = scmp.ne.s32.totalorder %s269, %s270
      %p284 = scmp.eq.s32.totalorder %s38, 1
      %p285 = por %p283, %p284
      %p287 = scmp.ne.s32.totalorder %s270, %s286
      %p288 = scmp.eq.s32.totalorder %s38, 0
      %p289 = por %p287, %p288
      %p290 = scmp.le.s32.totalorder 1, %s32
      %p291 = scmp.lt.s32.totalorder %s32, 3
      %p292 = pnand %p290, %p291
      %p293 = pneg %p292
      // Predicated region
      $region9: #{tpu_custom_call.1} parent=5 // pred_check
        _
      $region10: #{tpu_custom_call.1} parent=5 // pred_check_branch
        %295 = sbr.rel (%p292) target = $region12
      $region11: #{tpu_custom_call.1} parent=5 // pred_region
        %s296 = ssub.s32 %s32, 1
        // Predicated region
        $region13: #{tpu_custom_call.1} parent=11 // pred_check
          %p297 = pneg %p79
        $region14: #{tpu_custom_call.1} parent=11 // pred_check_branch
          %299 = sbr.rel (%p297) target = $region16
        $region15: #{tpu_custom_call.1} parent=11 // pred_region
          %s301 = ssub.s32 768, 768
          %302 = vsyncadd [#allocation6], %s301
          %s303 = sshll.u32 [#allocation5], 4
          %s304 = int_to_ptr.vmem [resolvable:$true] %s303
          %309 = dma.hbm_to_vmem [thread:$0]  %s1, 768, %s304, [#allocation6], 128, 128, 8
        $region16: #{tpu_custom_call.1} parent=11 // pred_fallthru
          _
        // Predicated region
        $region17: #{tpu_custom_call.1} parent=11 // pred_check
          %p310 = pneg %p126
        $region18: #{tpu_custom_call.1} parent=11 // pred_check_branch
          %312 = sbr.rel (%p310) target = $region20
        $region19: #{tpu_custom_call.1} parent=11 // pred_region
          %s314 = ssub.s32 64, 64
          %315 = vsyncadd [#allocation6], %s314
          %s317 = sshll.u32 [#allocation8], 4
          %s318 = int_to_ptr.vmem [resolvable:$true] %s317
          %320 = dma.hbm_to_vmem [thread:$0]  %s3, 64, %s318, [#allocation6]
        $region20: #{tpu_custom_call.1} parent=11 // pred_fallthru
          _
      $region12: #{tpu_custom_call.1} parent=5 // pred_fallthru
        _
      %p321 = scmp.lt.s32.totalorder %s32, 2
      // Predicated region
      $region21: #{tpu_custom_call.1} parent=5 // pred_check
        %p322 = pneg %p321
      $region22: #{tpu_custom_call.1} parent=5 // pred_check_branch
        %324 = sbr.rel (%p322) target = $region24
      $region23: #{tpu_custom_call.1} parent=5 // pred_region
        // Predicated region
        $region25: #{tpu_custom_call.1} parent=23 // pred_check
          %p325 = pneg %p52
        $region26: #{tpu_custom_call.1} parent=23 // pred_check_branch
          %327 = sbr.rel (%p325) target = $region28
        $region27: #{tpu_custom_call.1} parent=23 // pred_region
          %s328 = sand.u32 %s32, 1
          %s329 = scalar_lea.sflag [#allocation3], %s328
          %s330 = sand.u32 %s42, 1
          %s331 = smul.addr %s330, 144
          %s332 = scalar_lea.vmem [#allocation2], %s331
          %s334 = ssub.s32 2304, 2304
          %335 = vsyncadd %s329, %s334
          %s336 = smul.addr %s32, 18
          %s337 = smul.addr %s336, 128
          %s338 = scalar_lea.hbm %s0, %s337
          %s339 = sshll.u32 %s332, 4
          %s340 = int_to_ptr.vmem [resolvable:$true] %s339
          %345 = dma.hbm_to_vmem [thread:$0]  %s338, 2304, %s340, %s329, 128, 128, 8
        $region28: #{tpu_custom_call.1} parent=23 // pred_fallthru
          _
        // Predicated region
        $region29: #{tpu_custom_call.1} parent=23 // pred_check
          %p346 = pneg %p99
        $region30: #{tpu_custom_call.1} parent=23 // pred_check_branch
          %348 = sbr.rel (%p346) target = $region32
        $region31: #{tpu_custom_call.1} parent=23 // pred_region
          %s349 = sand.u32 %s32, 1
          %s350 = scalar_lea.sflag [#allocation3], %s349
          %s351 = sand.u32 %s89, 1
          %s352 = smul.addr %s351, 64
          %s353 = scalar_lea.vmem [#allocation7], %s352
          %s355 = ssub.s32 1024, 1024
          %356 = vsyncadd %s350, %s355
          %s357 = smul.addr %s32, 8
          %s358 = smul.addr %s357, 128
          %s359 = scalar_lea.hbm %s2, %s358
          %s360 = sshll.u32 %s353, 4
          %s361 = int_to_ptr.vmem [resolvable:$true] %s360
          %366 = dma.hbm_to_vmem [thread:$0]  %s359, 1024, %s361, %s350, 128, 128, 8
        $region32: #{tpu_custom_call.1} parent=23 // pred_fallthru
          _
      $region24: #{tpu_custom_call.1} parent=5 // pred_fallthru
        _
      %p367 = scmp.le.s32.totalorder 1, %s32
      %p368 = scmp.lt.s32.totalorder %s32, 3
      %p369 = pnand %p367, %p368
      %p370 = pneg %p369
      // Predicated region
      $region33: #{tpu_custom_call.1} parent=5 // pred_check
        _
      $region34: #{tpu_custom_call.1} parent=5 // pred_check_branch
        %372 = sbr.rel (%p369) target = $region36
      $region35: #{tpu_custom_call.1} parent=5 // pred_region
        %s373 = ssub.s32 %s32, 1
        %s374 = sand.u32 %s37, 1
        %s375 = scalar_lea.sflag [#allocation3], %s374
        %s376 = sand.u32 %s45, 1
        %s377 = smul.addr %s376, 144
        %s378 = scalar_lea.vmem [#allocation2], %s377
        // Predicated region
        $region37: #{tpu_custom_call.1} parent=35 // pred_check
          %p379 = pneg %p58
        $region38: #{tpu_custom_call.1} parent=35 // pred_check_branch
          %381 = sbr.rel (%p379) target = $region40
        $region39: #{tpu_custom_call.1} parent=35 // pred_region
          %382 = dma.done %s375, 2304
        $region40: #{tpu_custom_call.1} parent=35 // pred_fallthru
          _
        // Predicated region
        $region41: #{tpu_custom_call.1} parent=35 // pred_check
          %p383 = pneg %p79
        $region42: #{tpu_custom_call.1} parent=35 // pred_check_branch
          %385 = sbr.rel (%p383) target = $region44
        $region43: #{tpu_custom_call.1} parent=35 // pred_region
          %386 = dma.done [#allocation6], 768
        $region44: #{tpu_custom_call.1} parent=35 // pred_fallthru
          _
        %s387 = sand.u32 %s37, 1
        %s388 = scalar_lea.sflag [#allocation3], %s387
        %s389 = sand.u32 %s92, 1
        %s390 = smul.addr %s389, 64
        %s391 = scalar_lea.vmem [#allocation7], %s390
        // Predicated region
        $region45: #{tpu_custom_call.1} parent=35 // pred_check
          %p392 = pneg %p105
        $region46: #{tpu_custom_call.1} parent=35 // pred_check_branch
          %394 = sbr.rel (%p392) target = $region48
        $region47: #{tpu_custom_call.1} parent=35 // pred_region
          %395 = dma.done %s388, 1024
        $region48: #{tpu_custom_call.1} parent=35 // pred_fallthru
          _
        // Predicated region
        $region49: #{tpu_custom_call.1} parent=35 // pred_check
          %p396 = pneg %p126
        $region50: #{tpu_custom_call.1} parent=35 // pred_check_branch
          %398 = sbr.rel (%p396) target = $region52
        $region51: #{tpu_custom_call.1} parent=35 // pred_region
          %399 = dma.done [#allocation6], 64
        $region52: #{tpu_custom_call.1} parent=35 // pred_fallthru
          _
        %s400 = sand.u32 %s37, 1
        %s401 = scalar_lea.sflag [#allocation3], %s400
        %s402 = sand.u32 %s45, 1
        %s403 = smul.addr %s402, 144
        %s404 = scalar_lea.vmem [#allocation2], %s403
        %p405 = pneg %p58
        %p406 = pneg %p55
        %p407 = pneg %p79
        %p408 = pneg %p76
        %s409 = sand.u32 %s37, 1
        %s410 = scalar_lea.sflag [#allocation3], %s409
        %s411 = sand.u32 %s92, 1
        %s412 = smul.addr %s411, 64
        %s413 = scalar_lea.vmem [#allocation7], %s412
        %p414 = pneg %p105
        %p415 = pneg %p102
        %p416 = pneg %p126
        %p417 = pneg %p123
        %p418 = pneg %p152
        %p419 = pneg %p149
        %s420 = sand.u32 %s139, 1
        %s421 = scalar_lea.sflag [#allocation4], %s420
        %s422 = sand.u32 %s139, 1
        %s423 = smul.addr %s422, 64
        %s424 = scalar_lea.vmem [#allocation9], %s423
        %p425 = pneg %p178
        %p426 = pneg %p175
        %s427 = sand.u32 %s37, 1
        %s428 = scalar_lea.sflag [#allocation11], %s427
        %s429 = sand.u32 %s165, 1
        %s430 = scalar_lea.vmem [#allocation10], %s429
        %p431 = pneg %p204
        %p432 = pneg %p201
        %s433 = sand.u32 %s37, 1
        %s434 = scalar_lea.sflag [#allocation11], %s433
        %s435 = sand.u32 %s191, 1
        %s436 = scalar_lea.vmem [#allocation12], %s435
        %p437 = pneg %p230
        %p438 = pneg %p227
        %s439 = sand.u32 %s37, 1
        %s440 = scalar_lea.sflag [#allocation14], %s439
        %s441 = sand.u32 %s217, 1
        %s442 = smul.addr %s441, 64
        %s443 = scalar_lea.vmem [#allocation13], %s442
        %p444 = pneg %p256
        %p445 = pneg %p253
        %s446 = sand.u32 %s37, 1
        %s447 = scalar_lea.sflag [#allocation14], %s446
        %s448 = sand.u32 %s243, 1
        %s449 = scalar_lea.vmem [#allocation15], %s448
        %p450 = pneg %p282
        %p451 = pneg %p279
        %s452 = sand.u32 %s269, 1
        %s453 = scalar_lea.sflag [#allocation17], %s452
        %s454 = sand.u32 %s269, 1
        %s455 = scalar_lea.vmem [#allocation16], %s454
        %s456 = smul.u32 8, %s37
        %s457 = smul.u32 8, %s37
        %v458 = vld [vmem:[%s378] sm:$0xff]
        %v459 = vld [vmem:[%s378 + $0x8] sm:$0xff]
        %v460 = vld [vmem:[%s378 + $0x10] sm:$0xff]
        %v461 = vld [vmem:[%s378 + $0x18] sm:$0xff]
        %v462 = vld [vmem:[%s378 + $0x20] sm:$0xff]
        %v463 = vld [vmem:[%s378 + $0x28] sm:$0xff]
        %v464 = vld [vmem:[%s378 + $0x30] sm:$0xff]
        %v465 = vld [vmem:[%s378 + $0x38] sm:$0xff]
        %v466 = vld [vmem:[#allocation5] sm:$0xff]
        %v467 = vld [vmem:[#allocation5 + $0x8] sm:$0xf]
        %s468 = sadd.s32 0, 72
        %s469 = scalar_lea.vmem %s378, %s468 [#allocation2]
        %v470 = vld [vmem:[%s469] sm:$0xff]
        %v471 = vld [vmem:[%s469 + $0x8] sm:$0xff]
        %v472 = vld [vmem:[%s469 + $0x10] sm:$0xff]
        %v473 = vld [vmem:[%s469 + $0x18] sm:$0xff]
        %v474 = vld [vmem:[%s469 + $0x20] sm:$0xff]
        %v475 = vld [vmem:[%s469 + $0x28] sm:$0xff]
        %v476 = vld [vmem:[%s469 + $0x30] sm:$0xff]
        %v477 = vld [vmem:[%s469 + $0x38] sm:$0xff]
        %s478 = scalar_lea.vmem [#allocation5], 16
        %v479 = vld [vmem:[%s478] sm:$0xff]
        %v480 = vld [vmem:[%s478 + $0x8] sm:$0xf]
        %vm481 = vcmask 97280
        %v483 = vsel %vm481, %v470, 0
        %v486 = vsel %vm481, %v471, 0
        %v489 = vsel %vm481, %v472, 0
        %v492 = vsel %vm481, %v473, 0
        %v495 = vsel %vm481, %v474, 0
        %v498 = vsel %vm481, %v475, 0
        %v501 = vsel %vm481, %v476, 0
        %v504 = vsel %vm481, %v477, 0
        %vm506 = vcmask 1043456
        %v508 = vsel %vm506, %v480, 0
        %510 = vmatprep.subr.mxu0 0.0
        %511 = vmatpush1.msra.mxu0 %v479
        %512 = vmatprep.subr.mxu0 0.0
        %513 = vmatpush1.msra.mxu0 %v508
        %514 = vmatprep.subr.mxu0 0.0
        %515 = vmatpush1.msra.mxu0 0.0
        %516 = vmatprep.subr.mxu0 0.0
        %517 = vmatpush1.msra.mxu0 0.0
        %518 = vmatprep.subr.mxu0 0.0
        %519 = vmatpush1.msra.mxu0 0.0
        %520 = vmatprep.subr.mxu0 0.0
        %521 = vmatpush1.msra.mxu0 0.0
        %522 = vmatprep.subr.mxu0 0.0
        %523 = vmatpush1.msra.mxu0 0.0
        %524 = vmatprep.subr.mxu0 0.0
        %525 = vmatpush1.msra.mxu0 0.0
        %526 = vmatprep.subr.mxu0 0.0
        %527 = vmatpush1.msra.mxu0 0.0
        %528 = vmatprep.subr.mxu0 0.0
        %529 = vmatpush1.msra.mxu0 0.0
        %530 = vmatprep.subr.mxu0 0.0
        %531 = vmatpush1.msra.mxu0 0.0
        %532 = vmatprep.subr.mxu0 0.0
        %533 = vmatpush1.msra.mxu0 0.0
        %534 = vmatprep.subr.mxu0 0.0
        %535 = vmatpush1.msra.mxu0 0.0
        %536 = vmatprep.subr.mxu0 0.0
        %537 = vmatpush1.msra.mxu0 0.0
        %538 = vmatprep.subr.mxu0 0.0
        %539 = vmatpush1.msra.mxu0 0.0
        %540 = vmatprep.subr.mxu0 0.0
        %541 = vmatpush1.msra.mxu0 0.0
        %542 = vmatprep.subr.mxu0 0.0
        %543 = vmatpush1.msra.mxu0 0.0
        %544 = vmatprep.subr.mxu0 0.0
        %545 = vmatpush1.msra.mxu0 0.0
        %546 = vmatprep.subr.mxu0 0.0
        %547 = vmatpush1.msra.mxu0 0.0
        %548 = vmatprep.subr.mxu0 0.0
        %549 = vmatpush1.msra.mxu0 0.0
        %550 = vmatprep.subr.mxu0 0.0
        %551 = vmatpush1.msra.mxu0 0.0
        %552 = vmatprep.subr.mxu0 0.0
        %553 = vmatpush1.msra.mxu0 0.0
        %554 = vmatprep.subr.mxu0 0.0
        %555 = vmatpush1.msra.mxu0 0.0
        %556 = vmatprep.subr.mxu0 0.0
        %557 = vmatpush1.msra.mxu0 0.0
        %558 = vmatprep.subr.mxu0 0.0
        %559 = vmatpush1.msra.mxu0 0.0
        %560 = vmatprep.subr.mxu0 0.0
        %561 = vmatpush1.msra.mxu0 0.0
        %562 = vmatprep.subr.mxu0 0.0
        %563 = vmatpush1.msra.mxu0 0.0
        %564 = vmatprep.subr.mxu0 0.0
        %565 = vmatpush1.msra.mxu0 0.0
        %566 = vmatprep.subr.mxu0 0.0
        %567 = vmatpush1.msra.mxu0 0.0
        %568 = vmatprep.subr.mxu0 0.0
        %569 = vmatpush1.msra.mxu0 0.0
        %570 = vmatprep.subr.mxu0 0.0
        %571 = vmatpush1.msra.mxu0 0.0
        %572 = vmatprep.subr.mxu0 0.0
        %573 = vmatpush1.msra.mxu0 0.0
        %574 = vmatprep.mubr.f32.mxu0 0.0
        %575 = vmatmul.mubr.f32.gmra.mrb[0].mxu0 %v483
        %v576 = vpop.f32.mrb[0].mxu0
        %v577 = vadd.f32 0.0, %v576
        %v578 = vpop.f32.mrb[0].mxu0
        %579 = vmatprep.mubr.f32.mxu0 0.0
        %580 = vmatmul.mubr.f32.gmra.mrb[0].mxu0 %v486
        %v581 = vpop.f32.mrb[0].mxu0
        %v582 = vadd.f32 0.0, %v581
        %v583 = vpop.f32.mrb[0].mxu0
        %584 = vmatprep.mubr.f32.mxu0 0.0
        %585 = vmatmul.mubr.f32.gmra.mrb[0].mxu0 %v489
        %v586 = vpop.f32.mrb[0].mxu0
        %v587 = vadd.f32 0.0, %v586
        %v588 = vpop.f32.mrb[0].mxu0
        %589 = vmatprep.mubr.f32.mxu0 0.0
        %590 = vmatmul.mubr.f32.gmra.mrb[0].mxu0 %v492
        %v591 = vpop.f32.mrb[0].mxu0
        %v592 = vadd.f32 0.0, %v591
        %v593 = vpop.f32.mrb[0].mxu0
        %594 = vmatprep.mubr.f32.mxu0 0.0
        %595 = vmatmul.mubr.f32.gmra.mrb[0].mxu0 %v495
        %v596 = vpop.f32.mrb[0].mxu0
        %v597 = vadd.f32 0.0, %v596
        %v598 = vpop.f32.mrb[0].mxu0
        %599 = vmatprep.mubr.f32.mxu0 0.0
        %600 = vmatmul.mubr.f32.gmra.mrb[0].mxu0 %v498
        %v601 = vpop.f32.mrb[0].mxu0
        %v602 = vadd.f32 0.0, %v601
        %v603 = vpop.f32.mrb[0].mxu0
        %604 = vmatprep.mubr.f32.mxu0 0.0
        %605 = vmatmul.mubr.f32.gmra.mrb[0].mxu0 %v501
        %v606 = vpop.f32.mrb[0].mxu0
        %v607 = vadd.f32 0.0, %v606
        %v608 = vpop.f32.mrb[0].mxu0
        %609 = vmatprep.mubr.f32.mxu0 0.0
        %610 = vmatmul.mubr.f32.gmra.mrb[0].mxu0 %v504
        %v611 = vpop.f32.mrb[0].mxu0
        %v612 = vadd.f32 0.0, %v611
        %v613 = vpop.f32.mrb[0].mxu0
        %614 = vdwg.mxu0
        %v616 = vsel %vm481, %v458, 0
        %v619 = vsel %vm481, %v459, 0
        %v622 = vsel %vm481, %v460, 0
        %v625 = vsel %vm481, %v461, 0
        %v628 = vsel %vm481, %v462, 0
        %v631 = vsel %vm481, %v463, 0
        %v634 = vsel %vm481, %v464, 0
        %v637 = vsel %vm481, %v465, 0
        %v640 = vsel %vm506, %v467, 0
        %642 = vmatprep.subr.mxu0 0.0
        %643 = vmatpush1.msra.mxu0 %v466
        %644 = vmatprep.subr.mxu0 0.0
        %645 = vmatpush1.msra.mxu0 %v640
        %646 = vmatprep.subr.mxu0 0.0
        %647 = vmatpush1.msra.mxu0 0.0
        %648 = vmatprep.subr.mxu0 0.0
        %649 = vmatpush1.msra.mxu0 0.0
        %650 = vmatprep.subr.mxu0 0.0
        %651 = vmatpush1.msra.mxu0 0.0
        %652 = vmatprep.subr.mxu0 0.0
        %653 = vmatpush1.msra.mxu0 0.0
        %654 = vmatprep.subr.mxu0 0.0
        %655 = vmatpush1.msra.mxu0 0.0
        %656 = vmatprep.subr.mxu0 0.0
        %657 = vmatpush1.msra.mxu0 0.0
        %658 = vmatprep.subr.mxu0 0.0
        %659 = vmatpush1.msra.mxu0 0.0
        %660 = vmatprep.subr.mxu0 0.0
        %661 = vmatpush1.msra.mxu0 0.0
        %662 = vmatprep.subr.mxu0 0.0
        %663 = vmatpush1.msra.mxu0 0.0
        %664 = vmatprep.subr.mxu0 0.0
        %665 = vmatpush1.msra.mxu0 0.0
        %666 = vmatprep.subr.mxu0 0.0
        %667 = vmatpush1.msra.mxu0 0.0
        %668 = vmatprep.subr.mxu0 0.0
        %669 = vmatpush1.msra.mxu0 0.0
        %670 = vmatprep.subr.mxu0 0.0
        %671 = vmatpush1.msra.mxu0 0.0
        %672 = vmatprep.subr.mxu0 0.0
        %673 = vmatpush1.msra.mxu0 0.0
        %674 = vmatprep.subr.mxu0 0.0
        %675 = vmatpush1.msra.mxu0 0.0
        %676 = vmatprep.subr.mxu0 0.0
        %677 = vmatpush1.msra.mxu0 0.0
        %678 = vmatprep.subr.mxu0 0.0
        %679 = vmatpush1.msra.mxu0 0.0
        %680 = vmatprep.subr.mxu0 0.0
        %681 = vmatpush1.msra.mxu0 0.0
        %682 = vmatprep.subr.mxu0 0.0
        %683 = vmatpush1.msra.mxu0 0.0
        %684 = vmatprep.subr.mxu0 0.0
        %685 = vmatpush1.msra.mxu0 0.0
        %686 = vmatprep.subr.mxu0 0.0
        %687 = vmatpush1.msra.mxu0 0.0
        %688 = vmatprep.subr.mxu0 0.0
        %689 = vmatpush1.msra.mxu0 0.0
        %690 = vmatprep.subr.mxu0 0.0
        %691 = vmatpush1.msra.mxu0 0.0
        %692 = vmatprep.subr.mxu0 0.0
        %693 = vmatpush1.msra.mxu0 0.0
        %694 = vmatprep.subr.mxu0 0.0
        %695 = vmatpush1.msra.mxu0 0.0
        %696 = vmatprep.subr.mxu0 0.0
        %697 = vmatpush1.msra.mxu0 0.0
        %698 = vmatprep.subr.mxu0 0.0
        %699 = vmatpush1.msra.mxu0 0.0
        %700 = vmatprep.subr.mxu0 0.0
        %701 = vmatpush1.msra.mxu0 0.0
        %702 = vmatprep.subr.mxu0 0.0
        %703 = vmatpush1.msra.mxu0 0.0
        %704 = vmatprep.subr.mxu0 0.0
        %705 = vmatpush1.msra.mxu0 0.0
        %706 = vmatprep.mubr.f32.mxu0 0.0
        %707 = vmatmul.mubr.f32.gmra.mrb[0].mxu0 %v616
        %v708 = vpop.f32.mrb[0].mxu0
        %v709 = vadd.f32 %v577, %v708
        %v710 = vpop.f32.mrb[0].mxu0
        %711 = vmatprep.mubr.f32.mxu0 0.0
        %712 = vmatmul.mubr.f32.gmra.mrb[0].mxu0 %v619
        %v713 = vpop.f32.mrb[0].mxu0
        %v714 = vadd.f32 %v582, %v713
        %v715 = vpop.f32.mrb[0].mxu0
        %716 = vmatprep.mubr.f32.mxu0 0.0
        %717 = vmatmul.mubr.f32.gmra.mrb[0].mxu0 %v622
        %v718 = vpop.f32.mrb[0].mxu0
        %v719 = vadd.f32 %v587, %v718
        %v720 = vpop.f32.mrb[0].mxu0
        %721 = vmatprep.mubr.f32.mxu0 0.0
        %722 = vmatmul.mubr.f32.gmra.mrb[0].mxu0 %v625
        %v723 = vpop.f32.mrb[0].mxu0
        %v724 = vadd.f32 %v592, %v723
        %v725 = vpop.f32.mrb[0].mxu0
        %726 = vmatprep.mubr.f32.mxu0 0.0
        %727 = vmatmul.mubr.f32.gmra.mrb[0].mxu0 %v628
        %v728 = vpop.f32.mrb[0].mxu0
        %v729 = vadd.f32 %v597, %v728
        %v730 = vpop.f32.mrb[0].mxu0
        %731 = vmatprep.mubr.f32.mxu0 0.0
        %732 = vmatmul.mubr.f32.gmra.mrb[0].mxu0 %v631
        %v733 = vpop.f32.mrb[0].mxu0
        %v734 = vadd.f32 %v602, %v733
        %v735 = vpop.f32.mrb[0].mxu0
        %736 = vmatprep.mubr.f32.mxu0 0.0
        %737 = vmatmul.mubr.f32.gmra.mrb[0].mxu0 %v634
        %v738 = vpop.f32.mrb[0].mxu0
        %v739 = vadd.f32 %v607, %v738
        %v740 = vpop.f32.mrb[0].mxu0
        %741 = vmatprep.mubr.f32.mxu0 0.0
        %742 = vmatmul.mubr.f32.gmra.mrb[0].mxu0 %v637
        %v743 = vpop.f32.mrb[0].mxu0
        %v744 = vadd.f32 %v612, %v743
        %v745 = vpop.f32.mrb[0].mxu0
        %746 = vdwg.mxu0
        %s747 = sadd.s32 0, 8
        %s748 = scalar_lea.vmem %s378, %s747 [#allocation2]
        %v749 = vld [vmem:[%s748] sm:$0xff]
        %v750 = vld [vmem:[%s748 + $0x8] sm:$0xff]
        %v751 = vld [vmem:[%s748 + $0x10] sm:$0xff]
        %v752 = vld [vmem:[%s748 + $0x18] sm:$0xff]
        %v753 = vld [vmem:[%s748 + $0x20] sm:$0xff]
        %v754 = vld [vmem:[%s748 + $0x28] sm:$0xff]
        %v755 = vld [vmem:[%s748 + $0x30] sm:$0xff]
        %v756 = vld [vmem:[%s748 + $0x38] sm:$0xff]
        %s757 = scalar_lea.vmem [#allocation5], 32
        %v758 = vld [vmem:[%s757] sm:$0xff]
        %v759 = vld [vmem:[%s757 + $0x8] sm:$0xf]
        %v761 = vsel %vm481, %v749, 0
        %v764 = vsel %vm481, %v750, 0
        %v767 = vsel %vm481, %v751, 0
        %v770 = vsel %vm481, %v752, 0
        %v773 = vsel %vm481, %v753, 0
        %v776 = vsel %vm481, %v754, 0
        %v779 = vsel %vm481, %v755, 0
        %v782 = vsel %vm481, %v756, 0
        %v785 = vsel %vm506, %v759, 0
        %787 = vmatprep.subr.mxu0 0.0
        %788 = vmatpush1.msra.mxu0 %v758
        %789 = vmatprep.subr.mxu0 0.0
        %790 = vmatpush1.msra.mxu0 %v785
        %791 = vmatprep.subr.mxu0 0.0
        %792 = vmatpush1.msra.mxu0 0.0
        %793 = vmatprep.subr.mxu0 0.0
        %794 = vmatpush1.msra.mxu0 0.0
        %795 = vmatprep.subr.mxu0 0.0
        %796 = vmatpush1.msra.mxu0 0.0
        %797 = vmatprep.subr.mxu0 0.0
        %798 = vmatpush1.msra.mxu0 0.0
        %799 = vmatprep.subr.mxu0 0.0
        %800 = vmatpush1.msra.mxu0 0.0
        %801 = vmatprep.subr.mxu0 0.0
        %802 = vmatpush1.msra.mxu0 0.0
        %803 = vmatprep.subr.mxu0 0.0
        %804 = vmatpush1.msra.mxu0 0.0
        %805 = vmatprep.subr.mxu0 0.0
        %806 = vmatpush1.msra.mxu0 0.0
        %807 = vmatprep.subr.mxu0 0.0
        %808 = vmatpush1.msra.mxu0 0.0
        %809 = vmatprep.subr.mxu0 0.0
        %810 = vmatpush1.msra.mxu0 0.0
        %811 = vmatprep.subr.mxu0 0.0
        %812 = vmatpush1.msra.mxu0 0.0
        %813 = vmatprep.subr.mxu0 0.0
        %814 = vmatpush1.msra.mxu0 0.0
        %815 = vmatprep.subr.mxu0 0.0
        %816 = vmatpush1.msra.mxu0 0.0
        %817 = vmatprep.subr.mxu0 0.0
        %818 = vmatpush1.msra.mxu0 0.0
        %819 = vmatprep.subr.mxu0 0.0
        %820 = vmatpush1.msra.mxu0 0.0
        %821 = vmatprep.subr.mxu0 0.0
        %822 = vmatpush1.msra.mxu0 0.0
        %823 = vmatprep.subr.mxu0 0.0
        %824 = vmatpush1.msra.mxu0 0.0
        %825 = vmatprep.subr.mxu0 0.0
        %826 = vmatpush1.msra.mxu0 0.0
        %827 = vmatprep.subr.mxu0 0.0
        %828 = vmatpush1.msra.mxu0 0.0
        %829 = vmatprep.subr.mxu0 0.0
        %830 = vmatpush1.msra.mxu0 0.0
        %831 = vmatprep.subr.mxu0 0.0
        %832 = vmatpush1.msra.mxu0 0.0
        %833 = vmatprep.subr.mxu0 0.0
        %834 = vmatpush1.msra.mxu0 0.0
        %835 = vmatprep.subr.mxu0 0.0
        %836 = vmatpush1.msra.mxu0 0.0
        %837 = vmatprep.subr.mxu0 0.0
        %838 = vmatpush1.msra.mxu0 0.0
        %839 = vmatprep.subr.mxu0 0.0
        %840 = vmatpush1.msra.mxu0 0.0
        %841 = vmatprep.subr.mxu0 0.0
        %842 = vmatpush1.msra.mxu0 0.0
        %843 = vmatprep.subr.mxu0 0.0
        %844 = vmatpush1.msra.mxu0 0.0
        %845 = vmatprep.subr.mxu0 0.0
        %846 = vmatpush1.msra.mxu0 0.0
        %847 = vmatprep.subr.mxu0 0.0
        %848 = vmatpush1.msra.mxu0 0.0
        %849 = vmatprep.subr.mxu0 0.0
        %850 = vmatpush1.msra.mxu0 0.0
        %851 = vmatprep.mubr.f32.mxu0 0.0
        %852 = vmatmul.mubr.f32.gmra.mrb[0].mxu0 %v761
        %v853 = vpop.f32.mrb[0].mxu0
        %v854 = vadd.f32 0.0, %v853
        %v855 = vpop.f32.mrb[0].mxu0
        %856 = vmatprep.mubr.f32.mxu0 0.0
        %857 = vmatmul.mubr.f32.gmra.mrb[0].mxu0 %v764
        %v858 = vpop.f32.mrb[0].mxu0
        %v859 = vadd.f32 0.0, %v858
        %v860 = vpop.f32.mrb[0].mxu0
        %861 = vmatprep.mubr.f32.mxu0 0.0
        %862 = vmatmul.mubr.f32.gmra.mrb[0].mxu0 %v767
        %v863 = vpop.f32.mrb[0].mxu0
        %v864 = vadd.f32 0.0, %v863
        %v865 = vpop.f32.mrb[0].mxu0
        %866 = vmatprep.mubr.f32.mxu0 0.0
        %867 = vmatmul.mubr.f32.gmra.mrb[0].mxu0 %v770
        %v868 = vpop.f32.mrb[0].mxu0
        %v869 = vadd.f32 0.0, %v868
        %v870 = vpop.f32.mrb[0].mxu0
        %871 = vmatprep.mubr.f32.mxu0 0.0
        %872 = vmatmul.mubr.f32.gmra.mrb[0].mxu0 %v773
        %v873 = vpop.f32.mrb[0].mxu0
        %v874 = vadd.f32 0.0, %v873
        %v875 = vpop.f32.mrb[0].mxu0
        %876 = vmatprep.mubr.f32.mxu0 0.0
        %877 = vmatmul.mubr.f32.gmra.mrb[0].mxu0 %v776
        %v878 = vpop.f32.mrb[0].mxu0
        %v879 = vadd.f32 0.0, %v878
        %v880 = vpop.f32.mrb[0].mxu0
        %881 = vmatprep.mubr.f32.mxu0 0.0
        %882 = vmatmul.mubr.f32.gmra.mrb[0].mxu0 %v779
        %v883 = vpop.f32.mrb[0].mxu0
        %v884 = vadd.f32 0.0, %v883
        %v885 = vpop.f32.mrb[0].mxu0
        %886 = vmatprep.mubr.f32.mxu0 0.0
        %887 = vmatmul.mubr.f32.gmra.mrb[0].mxu0 %v782
        %v888 = vpop.f32.mrb[0].mxu0
        %v889 = vadd.f32 0.0, %v888
        %v890 = vpop.f32.mrb[0].mxu0
        %891 = vdwg.mxu0
        %v892 = vadd.f32 %v709, %v854
        %v893 = vadd.f32 %v714, %v859
        %v894 = vadd.f32 %v719, %v864
        %v895 = vadd.f32 %v724, %v869
        %v896 = vadd.f32 %v729, %v874
        %v897 = vadd.f32 %v734, %v879
        %v898 = vadd.f32 %v739, %v884
        %v899 = vadd.f32 %v744, %v889
        %900 = vst [vmem:[%s424] sm:$0xff] %v892
        %901 = vst [vmem:[%s424 + $0x8] sm:$0xff] %v893
        %902 = vst [vmem:[%s424 + $0x10] sm:$0xff] %v894
        %903 = vst [vmem:[%s424 + $0x18] sm:$0xff] %v895
        %904 = vst [vmem:[%s424 + $0x20] sm:$0xff] %v896
        %905 = vst [vmem:[%s424 + $0x28] sm:$0xff] %v897
        %906 = vst [vmem:[%s424 + $0x30] sm:$0xff] %v898
        %907 = vst [vmem:[%s424 + $0x38] sm:$0xff] %v899
        %v908 = vadd.f32 %v892, %v893
        %v909 = vadd.f32 %v908, %v894
        %v910 = vadd.f32 %v909, %v895
        %v911 = vadd.f32 %v910, %v896
        %v912 = vadd.f32 %v911, %v897
        %v913 = vadd.f32 %v912, %v898
        %v914 = vadd.f32 %v913, %v899
        %v915 = vrot.slane %v914, 4
        %v916 = vadd.f32 %v914, %v915
        %v917 = vrot.slane %v916, 2
        %v918 = vadd.f32 %v916, %v917
        %v919 = vrot.slane %v918, 1
        %v920 = vadd.f32 %v918, %v919
        %v921 = vadd.f32 %v920, 0.0
        %v922 = vmul.f32 %v892, %v892
        %v923 = vmul.f32 %v893, %v893
        %v924 = vmul.f32 %v894, %v894
        %v925 = vmul.f32 %v895, %v895
        %v926 = vmul.f32 %v896, %v896
        %v927 = vmul.f32 %v897, %v897
        %v928 = vmul.f32 %v898, %v898
        %v929 = vmul.f32 %v899, %v899
        %v930 = vadd.f32 %v922, %v923
        %v931 = vadd.f32 %v930, %v924
        %v932 = vadd.f32 %v931, %v925
        %v933 = vadd.f32 %v932, %v926
        %v934 = vadd.f32 %v933, %v927
        %v935 = vadd.f32 %v934, %v928
        %v936 = vadd.f32 %v935, %v929
        %v937 = vrot.slane %v936, 4
        %v938 = vadd.f32 %v936, %v937
        %v939 = vrot.slane %v938, 2
        %v940 = vadd.f32 %v938, %v939
        %v941 = vrot.slane %v940, 1
        %v942 = vadd.f32 %v940, %v941
        %v943 = vadd.f32 %v942, 0.0
        %944 = vst [vmem:[%s430] sm:$0x1] %v921
        %945 = vst [vmem:[%s436] sm:$0x1] %v943
        %v946 = vld [vmem:[%s391] sm:$0xff]
        %v947 = vld [vmem:[%s391 + $0x8] sm:$0xff]
        %v948 = vld [vmem:[%s391 + $0x10] sm:$0xff]
        %v949 = vld [vmem:[%s391 + $0x18] sm:$0xff]
        %v950 = vld [vmem:[%s391 + $0x20] sm:$0xff]
        %v951 = vld [vmem:[%s391 + $0x28] sm:$0xff]
        %v952 = vld [vmem:[%s391 + $0x30] sm:$0xff]
        %v953 = vld [vmem:[%s391 + $0x38] sm:$0xff]
        %v954 = vld [vmem:[#allocation8] sm:$0xf]
        %vm955 = vcmask 31744
        %v957 = vsel %vm955, %v946, 0
        %v960 = vsel %vm955, %v947, 0
        %v963 = vsel %vm955, %v948, 0
        %v966 = vsel %vm955, %v949, 0
        %v969 = vsel %vm955, %v950, 0
        %v972 = vsel %vm955, %v951, 0
        %v975 = vsel %vm955, %v952, 0
        %v978 = vsel %vm955, %v953, 0
        %v981 = vsel %vm506, %v954, 0
        %983 = vmatprep.subr.mxu0 0.0
        %984 = vmatpush1.msra.mxu0 %v981
        %985 = vmatprep.subr.mxu0 0.0
        %986 = vmatpush1.msra.mxu0 0.0
        %987 = vmatprep.subr.mxu0 0.0
        %988 = vmatpush1.msra.mxu0 0.0
        %989 = vmatprep.subr.mxu0 0.0
        %990 = vmatpush1.msra.mxu0 0.0
        %991 = vmatprep.subr.mxu0 0.0
        %992 = vmatpush1.msra.mxu0 0.0
        %993 = vmatprep.subr.mxu0 0.0
        %994 = vmatpush1.msra.mxu0 0.0
        %995 = vmatprep.subr.mxu0 0.0
        %996 = vmatpush1.msra.mxu0 0.0
        %997 = vmatprep.subr.mxu0 0.0
        %998 = vmatpush1.msra.mxu0 0.0
        %999 = vmatprep.subr.mxu0 0.0
        %1000 = vmatpush1.msra.mxu0 0.0
        %1001 = vmatprep.subr.mxu0 0.0
        %1002 = vmatpush1.msra.mxu0 0.0
        %1003 = vmatprep.subr.mxu0 0.0
        %1004 = vmatpush1.msra.mxu0 0.0
        %1005 = vmatprep.subr.mxu0 0.0
        %1006 = vmatpush1.msra.mxu0 0.0
        %1007 = vmatprep.subr.mxu0 0.0
        %1008 = vmatpush1.msra.mxu0 0.0
        %1009 = vmatprep.subr.mxu0 0.0
        %1010 = vmatpush1.msra.mxu0 0.0
        %1011 = vmatprep.subr.mxu0 0.0
        %1012 = vmatpush1.msra.mxu0 0.0
        %1013 = vmatprep.subr.mxu0 0.0
        %1014 = vmatpush1.msra.mxu0 0.0
        %1015 = vmatprep.subr.mxu0 0.0
        %1016 = vmatpush1.msra.mxu0 0.0
        %1017 = vmatprep.subr.mxu0 0.0
        %1018 = vmatpush1.msra.mxu0 0.0
        %1019 = vmatprep.subr.mxu0 0.0
        %1020 = vmatpush1.msra.mxu0 0.0
        %1021 = vmatprep.subr.mxu0 0.0
        %1022 = vmatpush1.msra.mxu0 0.0
        %1023 = vmatprep.subr.mxu0 0.0
        %1024 = vmatpush1.msra.mxu0 0.0
        %1025 = vmatprep.subr.mxu0 0.0
        %1026 = vmatpush1.msra.mxu0 0.0
        %1027 = vmatprep.subr.mxu0 0.0
        %1028 = vmatpush1.msra.mxu0 0.0
        %1029 = vmatprep.subr.mxu0 0.0
        %1030 = vmatpush1.msra.mxu0 0.0
        %1031 = vmatprep.subr.mxu0 0.0
        %1032 = vmatpush1.msra.mxu0 0.0
        %1033 = vmatprep.subr.mxu0 0.0
        %1034 = vmatpush1.msra.mxu0 0.0
        %1035 = vmatprep.subr.mxu0 0.0
        %1036 = vmatpush1.msra.mxu0 0.0
        %1037 = vmatprep.subr.mxu0 0.0
        %1038 = vmatpush1.msra.mxu0 0.0
        %1039 = vmatprep.subr.mxu0 0.0
        %1040 = vmatpush1.msra.mxu0 0.0
        %1041 = vmatprep.subr.mxu0 0.0
        %1042 = vmatpush1.msra.mxu0 0.0
        %1043 = vmatprep.subr.mxu0 0.0
        %1044 = vmatpush1.msra.mxu0 0.0
        %1045 = vmatprep.subr.mxu0 0.0
        %1046 = vmatpush1.msra.mxu0 0.0
        %1047 = vmatprep.mubr.f32.mxu0 0.0
        %1048 = vmatmul.mubr.f32.gmra.mrb[0].mxu0 %v957
        %v1049 = vpop.f32.mrb[0].mxu0
        %v1050 = vadd.f32 0.0, %v1049
        %v1051 = vpop.f32.mrb[0].mxu0
        %1052 = vmatprep.mubr.f32.mxu0 0.0
        %1053 = vmatmul.mubr.f32.gmra.mrb[0].mxu0 %v960
        %v1054 = vpop.f32.mrb[0].mxu0
        %v1055 = vadd.f32 0.0, %v1054
        %v1056 = vpop.f32.mrb[0].mxu0
        %1057 = vmatprep.mubr.f32.mxu0 0.0
        %1058 = vmatmul.mubr.f32.gmra.mrb[0].mxu0 %v963
        %v1059 = vpop.f32.mrb[0].mxu0
        %v1060 = vadd.f32 0.0, %v1059
        %v1061 = vpop.f32.mrb[0].mxu0
        %1062 = vmatprep.mubr.f32.mxu0 0.0
        %1063 = vmatmul.mubr.f32.gmra.mrb[0].mxu0 %v966
        %v1064 = vpop.f32.mrb[0].mxu0
        %v1065 = vadd.f32 0.0, %v1064
        %v1066 = vpop.f32.mrb[0].mxu0
        %1067 = vmatprep.mubr.f32.mxu0 0.0
        %1068 = vmatmul.mubr.f32.gmra.mrb[0].mxu0 %v969
        %v1069 = vpop.f32.mrb[0].mxu0
        %v1070 = vadd.f32 0.0, %v1069
        %v1071 = vpop.f32.mrb[0].mxu0
        %1072 = vmatprep.mubr.f32.mxu0 0.0
        %1073 = vmatmul.mubr.f32.gmra.mrb[0].mxu0 %v972
        %v1074 = vpop.f32.mrb[0].mxu0
        %v1075 = vadd.f32 0.0, %v1074
        %v1076 = vpop.f32.mrb[0].mxu0
        %1077 = vmatprep.mubr.f32.mxu0 0.0
        %1078 = vmatmul.mubr.f32.gmra.mrb[0].mxu0 %v975
        %v1079 = vpop.f32.mrb[0].mxu0
        %v1080 = vadd.f32 0.0, %v1079
        %v1081 = vpop.f32.mrb[0].mxu0
        %1082 = vmatprep.mubr.f32.mxu0 0.0
        %1083 = vmatmul.mubr.f32.gmra.mrb[0].mxu0 %v978
        %v1084 = vpop.f32.mrb[0].mxu0
        %v1085 = vadd.f32 0.0, %v1084
        %v1086 = vpop.f32.mrb[0].mxu0
        %1087 = vdwg.mxu0
        %1088 = vst [vmem:[%s443] sm:$0xff] %v1050
        %1089 = vst [vmem:[%s443 + $0x8] sm:$0xff] %v1055
        %1090 = vst [vmem:[%s443 + $0x10] sm:$0xff] %v1060
        %1091 = vst [vmem:[%s443 + $0x18] sm:$0xff] %v1065
        %1092 = vst [vmem:[%s443 + $0x20] sm:$0xff] %v1070
        %1093 = vst [vmem:[%s443 + $0x28] sm:$0xff] %v1075
        %1094 = vst [vmem:[%s443 + $0x30] sm:$0xff] %v1080
        %1095 = vst [vmem:[%s443 + $0x38] sm:$0xff] %v1085
        %v1096 = vadd.f32 %v1050, %v1055
        %v1097 = vadd.f32 %v1096, %v1060
        %v1098 = vadd.f32 %v1097, %v1065
        %v1099 = vadd.f32 %v1098, %v1070
        %v1100 = vadd.f32 %v1099, %v1075
        %v1101 = vadd.f32 %v1100, %v1080
        %v1102 = vadd.f32 %v1101, %v1085
        %v1103 = vrot.slane %v1102, 4
        %v1104 = vadd.f32 %v1102, %v1103
        %v1105 = vrot.slane %v1104, 2
        %v1106 = vadd.f32 %v1104, %v1105
        %v1107 = vrot.slane %v1106, 1
        %v1108 = vadd.f32 %v1106, %v1107
        %v1109 = vadd.f32 %v1108, 0.0
        %v1110 = vmul.f32 %v1050, %v1050
        %v1111 = vmul.f32 %v1055, %v1055
        %v1112 = vmul.f32 %v1060, %v1060
        %v1113 = vmul.f32 %v1065, %v1065
        %v1114 = vmul.f32 %v1070, %v1070
        %v1115 = vmul.f32 %v1075, %v1075
        %v1116 = vmul.f32 %v1080, %v1080
        %v1117 = vmul.f32 %v1085, %v1085
        %v1118 = vadd.f32 %v1110, %v1111
        %v1119 = vadd.f32 %v1118, %v1112
        %v1120 = vadd.f32 %v1119, %v1113
        %v1121 = vadd.f32 %v1120, %v1114
        %v1122 = vadd.f32 %v1121, %v1115
        %v1123 = vadd.f32 %v1122, %v1116
        %v1124 = vadd.f32 %v1123, %v1117
        %v1125 = vrot.slane %v1124, 4
        %v1126 = vadd.f32 %v1124, %v1125
        %v1127 = vrot.slane %v1126, 2
        %v1128 = vadd.f32 %v1126, %v1127
        %v1129 = vrot.slane %v1128, 1
        %v1130 = vadd.f32 %v1128, %v1129
        %v1131 = vadd.f32 %v1130, 0.0
        %1132 = vst [vmem:[%s449] sm:$0x1] %v1109
        %1133 = vst [vmem:[%s455] sm:$0x1] %v1131
        %s1134 = sand.u32 %s139, 1
        %s1135 = scalar_lea.sflag [#allocation4], %s1134
        %s1136 = sand.u32 %s139, 1
        %s1137 = smul.addr %s1136, 64
        %s1138 = scalar_lea.vmem [#allocation9], %s1137
        %s1139 = sand.u32 %s37, 1
        %s1140 = scalar_lea.sflag [#allocation11], %s1139
        %s1141 = sand.u32 %s165, 1
        %s1142 = scalar_lea.vmem [#allocation10], %s1141
        %s1143 = sand.u32 %s37, 1
        %s1144 = scalar_lea.sflag [#allocation11], %s1143
        %s1145 = sand.u32 %s191, 1
        %s1146 = scalar_lea.vmem [#allocation12], %s1145
        %s1147 = sand.u32 %s37, 1
        %s1148 = scalar_lea.sflag [#allocation14], %s1147
        %s1149 = sand.u32 %s217, 1
        %s1150 = smul.addr %s1149, 64
        %s1151 = scalar_lea.vmem [#allocation13], %s1150
        %s1152 = sand.u32 %s37, 1
        %s1153 = scalar_lea.sflag [#allocation14], %s1152
        %s1154 = sand.u32 %s243, 1
        %s1155 = scalar_lea.vmem [#allocation15], %s1154
        %s1156 = sand.u32 %s269, 1
        %s1157 = scalar_lea.sflag [#allocation17], %s1156
        %s1158 = sand.u32 %s269, 1
        %s1159 = scalar_lea.vmem [#allocation16], %s1158
        // Predicated region
        $region53: #{tpu_custom_call.1} parent=35 // pred_check
          %p1160 = pneg %p149
        $region54: #{tpu_custom_call.1} parent=35 // pred_check_branch
          %1162 = sbr.rel (%p1160) target = $region56
        $region55: #{tpu_custom_call.1} parent=35 // pred_region
          %s1163 = smul.u32 8, %s37
          %s1165 = ssub.s32 1024, 1024
          %1166 = vsyncadd %s1135, %s1165
          %s1167 = smul.addr %s1163, 128
          %s1168 = scalar_lea.hbm %s4, %s1167
          %s1169 = sshll.u32 %s1138, 4
          %s1170 = int_to_ptr.vmem [resolvable:$true] %s1169
          %1175 = dma.vmem_to_hbm [thread:$0]  %s1170, 1024, %s1168, %s1135, 128, 128, 8
        $region56: #{tpu_custom_call.1} parent=35 // pred_fallthru
          _
        // Predicated region
        $region57: #{tpu_custom_call.1} parent=35 // pred_check
          %p1176 = pneg %p175
        $region58: #{tpu_custom_call.1} parent=35 // pred_check_branch
          %1178 = sbr.rel (%p1176) target = $region60
        $region59: #{tpu_custom_call.1} parent=35 // pred_region
          %s1180 = ssub.s32 16, 16
          %1181 = vsyncadd %s1140, %s1180
          %s1182 = smul.addr %s37, 16
          %s1183 = scalar_lea.hbm %s5, %s1182
          %s1185 = sshll.u32 %s1142, 4
          %s1186 = int_to_ptr.vmem [resolvable:$true] %s1185
          %1188 = dma.vmem_to_hbm [thread:$0]  %s1186, 16, %s1183, %s1140
        $region60: #{tpu_custom_call.1} parent=35 // pred_fallthru
          _
        // Predicated region
        $region61: #{tpu_custom_call.1} parent=35 // pred_check
          %p1189 = pneg %p201
        $region62: #{tpu_custom_call.1} parent=35 // pred_check_branch
          %1191 = sbr.rel (%p1189) target = $region64
        $region63: #{tpu_custom_call.1} parent=35 // pred_region
          %s1193 = ssub.s32 16, 16
          %1194 = vsyncadd %s1144, %s1193
          %s1195 = smul.addr %s37, 16
          %s1196 = scalar_lea.hbm %s6, %s1195
          %s1198 = sshll.u32 %s1146, 4
          %s1199 = int_to_ptr.vmem [resolvable:$true] %s1198
          %1201 = dma.vmem_to_hbm [thread:$0]  %s1199, 16, %s1196, %s1144
        $region64: #{tpu_custom_call.1} parent=35 // pred_fallthru
          _
        // Predicated region
        $region65: #{tpu_custom_call.1} parent=35 // pred_check
          %p1202 = pneg %p227
        $region66: #{tpu_custom_call.1} parent=35 // pred_check_branch
          %1204 = sbr.rel (%p1202) target = $region68
        $region67: #{tpu_custom_call.1} parent=35 // pred_region
          %s1205 = smul.u32 8, %s37
          %s1207 = ssub.s32 1024, 1024
          %1208 = vsyncadd %s1148, %s1207
          %s1209 = smul.addr %s1205, 128
          %s1210 = scalar_lea.hbm %s7, %s1209
          %s1211 = sshll.u32 %s1151, 4
          %s1212 = int_to_ptr.vmem [resolvable:$true] %s1211
          %1217 = dma.vmem_to_hbm [thread:$0]  %s1212, 1024, %s1210, %s1148, 128, 128, 8
        $region68: #{tpu_custom_call.1} parent=35 // pred_fallthru
          _
        // Predicated region
        $region69: #{tpu_custom_call.1} parent=35 // pred_check
          %p1218 = pneg %p253
        $region70: #{tpu_custom_call.1} parent=35 // pred_check_branch
          %1220 = sbr.rel (%p1218) target = $region72
        $region71: #{tpu_custom_call.1} parent=35 // pred_region
          %s1222 = ssub.s32 16, 16
          %1223 = vsyncadd %s1153, %s1222
          %s1224 = smul.addr %s37, 16
          %s1225 = scalar_lea.hbm %s8, %s1224
          %s1227 = sshll.u32 %s1155, 4
          %s1228 = int_to_ptr.vmem [resolvable:$true] %s1227
          %1230 = dma.vmem_to_hbm [thread:$0]  %s1228, 16, %s1225, %s1153
        $region72: #{tpu_custom_call.1} parent=35 // pred_fallthru
          _
        // Predicated region
        $region73: #{tpu_custom_call.1} parent=35 // pred_check
          %p1231 = pneg %p279
        $region74: #{tpu_custom_call.1} parent=35 // pred_check_branch
          %1233 = sbr.rel (%p1231) target = $region76
        $region75: #{tpu_custom_call.1} parent=35 // pred_region
          %s1235 = ssub.s32 16, 16
          %1236 = vsyncadd %s1157, %s1235
          %s1237 = smul.addr %s37, 16
          %s1238 = scalar_lea.hbm %s9, %s1237
          %s1240 = sshll.u32 %s1159, 4
          %s1241 = int_to_ptr.vmem [resolvable:$true] %s1240
          %1243 = dma.vmem_to_hbm [thread:$0]  %s1241, 16, %s1238, %s1157
        $region76: #{tpu_custom_call.1} parent=35 // pred_fallthru
          _
      $region36: #{tpu_custom_call.1} parent=5 // pred_fallthru
        _
      %p1244 = scmp.le.s32.totalorder 2, %s32
      // Predicated region
      $region77: #{tpu_custom_call.1} parent=5 // pred_check
        %p1245 = pneg %p1244
      $region78: #{tpu_custom_call.1} parent=5 // pred_check_branch
        %1247 = sbr.rel (%p1245) target = $region80
      $region79: #{tpu_custom_call.1} parent=5 // pred_region
        %s1248 = ssub.s32 %s32, 2
        // Predicated region
        $region81: #{tpu_custom_call.1} parent=79 // pred_check
          %p1249 = pneg %p155
        $region82: #{tpu_custom_call.1} parent=79 // pred_check_branch
          %1251 = sbr.rel (%p1249) target = $region84
        $region83: #{tpu_custom_call.1} parent=79 // pred_region
          %s1252 = sand.u32 %s140, 1
          %s1253 = scalar_lea.sflag [#allocation4], %s1252
          %s1254 = sand.u32 %s140, 1
          %s1255 = smul.addr %s1254, 64
          %s1256 = scalar_lea.vmem [#allocation9], %s1255
          %1257 = dma.done %s1253, 1024
        $region84: #{tpu_custom_call.1} parent=79 // pred_fallthru
          _
        // Predicated region
        $region85: #{tpu_custom_call.1} parent=79 // pred_check
          %p1258 = pneg %p181
        $region86: #{tpu_custom_call.1} parent=79 // pred_check_branch
          %1260 = sbr.rel (%p1258) target = $region88
        $region87: #{tpu_custom_call.1} parent=79 // pred_region
          %s1261 = sand.u32 %s38, 1
          %s1262 = scalar_lea.sflag [#allocation11], %s1261
          %s1263 = sand.u32 %s166, 1
          %s1264 = scalar_lea.vmem [#allocation10], %s1263
          %1265 = dma.done %s1262, 16
        $region88: #{tpu_custom_call.1} parent=79 // pred_fallthru
          _
        // Predicated region
        $region89: #{tpu_custom_call.1} parent=79 // pred_check
          %p1266 = pneg %p207
        $region90: #{tpu_custom_call.1} parent=79 // pred_check_branch
          %1268 = sbr.rel (%p1266) target = $region92
        $region91: #{tpu_custom_call.1} parent=79 // pred_region
          %s1269 = sand.u32 %s38, 1
          %s1270 = scalar_lea.sflag [#allocation11], %s1269
          %s1271 = sand.u32 %s192, 1
          %s1272 = scalar_lea.vmem [#allocation12], %s1271
          %1273 = dma.done %s1270, 16
        $region92: #{tpu_custom_call.1} parent=79 // pred_fallthru
          _
        // Predicated region
        $region93: #{tpu_custom_call.1} parent=79 // pred_check
          %p1274 = pneg %p233
        $region94: #{tpu_custom_call.1} parent=79 // pred_check_branch
          %1276 = sbr.rel (%p1274) target = $region96
        $region95: #{tpu_custom_call.1} parent=79 // pred_region
          %s1277 = sand.u32 %s38, 1
          %s1278 = scalar_lea.sflag [#allocation14], %s1277
          %s1279 = sand.u32 %s218, 1
          %s1280 = smul.addr %s1279, 64
          %s1281 = scalar_lea.vmem [#allocation13], %s1280
          %1282 = dma.done %s1278, 1024
        $region96: #{tpu_custom_call.1} parent=79 // pred_fallthru
          _
        // Predicated region
        $region97: #{tpu_custom_call.1} parent=79 // pred_check
          %p1283 = pneg %p259
        $region98: #{tpu_custom_call.1} parent=79 // pred_check_branch
          %1285 = sbr.rel (%p1283) target = $region100
        $region99: #{tpu_custom_call.1} parent=79 // pred_region
          %s1286 = sand.u32 %s38, 1
          %s1287 = scalar_lea.sflag [#allocation14], %s1286
          %s1288 = sand.u32 %s244, 1
          %s1289 = scalar_lea.vmem [#allocation15], %s1288
          %1290 = dma.done %s1287, 16
        $region100: #{tpu_custom_call.1} parent=79 // pred_fallthru
          _
        // Predicated region
        $region101: #{tpu_custom_call.1} parent=79 // pred_check
          %p1291 = pneg %p285
        $region102: #{tpu_custom_call.1} parent=79 // pred_check_branch
          %1293 = sbr.rel (%p1291) target = $region104
        $region103: #{tpu_custom_call.1} parent=79 // pred_region
          %s1294 = sand.u32 %s270, 1
          %s1295 = scalar_lea.sflag [#allocation17], %s1294
          %s1296 = sand.u32 %s270, 1
          %s1297 = scalar_lea.vmem [#allocation16], %s1296
          %1298 = dma.done %s1295, 16
        $region104: #{tpu_custom_call.1} parent=79 // pred_fallthru
          _
      $region80: #{tpu_custom_call.1} parent=5 // pred_fallthru
        _
    $region6: #{tpu_custom_call.1} parent=1 // loop_footer
      %s36 = sadd.s32 1, %s32
    $region7: #{tpu_custom_call.1} parent=1 // loop_footer_branch
      %31 = sbr.rel target = $region3
    $region8: #{tpu_custom_call.1} parent=1 // loop_exit
      _
    %1299 = vsyncpa [#allocation3], 1
    %s1300 = scalar_lea.sflag [#allocation3], 1
    %1301 = vsyncpa %s1300, 1
    %1302 = vsyncpa [#allocation6], 1
    %1303 = vsyncpa [#allocation4], 1
    %s1304 = scalar_lea.sflag [#allocation4], 1
    %1305 = vsyncpa %s1304, 1
    %1306 = vsyncpa [#allocation11], 1
    %s1307 = scalar_lea.sflag [#allocation11], 1
    %1308 = vsyncpa %s1307, 1
    %1309 = vsyncpa [#allocation14], 1
    %s1310 = scalar_lea.sflag [#allocation14], 1
    %1311 = vsyncpa %s1310, 1
    %1312 = vsyncpa [#allocation17], 1
    %s1313 = scalar_lea.sflag [#allocation17], 1
    %1314 = vsyncpa %s1313, 1

</llo_original>
